<compile_context>
chip_gen: v5e
topology: v5e:2x2
jax: 0.10.0
libtpu: 0.0.40
codegen_flags: <defaults>
</compile_context>

<pallas_src>
import functools

import jax
import jax.numpy as jnp
from jax.experimental import pallas as pl
from jax.experimental.pallas import tpu as pltpu


def _round_up(x, m):
    return (x + m - 1) // m * m


def _spatial_attention_kernel(x_ref, w_ref, o_ref,
                              sum_ref, max_ref, pad_ref, shift_ref,
                              *, h, w, k, pad, c_tile):
    """One (batch, channel-tile) grid step.

    x_ref    : (1, c_tile, H, W)  VMEM input block
    w_ref    : (2*K*K,)           SMEM conv weights; avg-channel taps pre-scaled by 1/C
    o_ref    : (1, 1, H, W)       VMEM output block (resident across the channel axis)
    sum_ref  : (H, W)      f32    running channel sum
    max_ref  : (H, W)      f32    running channel max
    pad_ref  : (2, Hp, Wp) f32    zero-padded [sum, max] planes, lane-padded to 128
    shift_ref: (Hp, Wq)    f32    per-dx lane-shifted copy, lane-padded to 128
    """
    ci = pl.program_id(1)
    last = pl.num_programs(1) - 1

    @pl.when(ci == 0)
    def _init():
        sum_ref[...] = jnp.zeros((h, w), jnp.float32)
        max_ref[...] = jnp.full((h, w), -jnp.inf, jnp.float32)

    # Single-pass fused sum + max over this channel tile (per-plane upcast).
    s = sum_ref[...]
    m = max_ref[...]
    for c in range(c_tile):
        plane = x_ref[0, c].astype(jnp.float32)
        s = s + plane
        m = jnp.maximum(m, plane)
    sum_ref[...] = s
    max_ref[...] = m

    @pl.when(ci == last)
    def _finalize():
        wpad = pad_ref.shape[-1]
        # Zero only the halo border; the interior is fully overwritten below.
        for c2 in range(2):
            pad_ref[c2, pl.ds(0, pad), :] = jnp.zeros((pad, wpad), jnp.float32)
            pad_ref[c2, pl.ds(pad + h, pad), :] = jnp.zeros((pad, wpad), jnp.float32)
            pad_ref[c2, pl.ds(pad, h), pl.ds(0, pad)] = (
                jnp.zeros((h, pad), jnp.float32))
            pad_ref[c2, pl.ds(pad, h), pl.ds(pad + w, wpad - (pad + w))] = (
                jnp.zeros((h, wpad - (pad + w)), jnp.float32))
        # 1/C is folded into the avg-channel weights, so store the raw sum.
        pad_ref[0, pl.ds(pad, h), pl.ds(pad, w)] = sum_ref[...]
        pad_ref[1, pl.ds(pad, h), pl.ds(pad, w)] = max_ref[...]

        # KxK cross-correlation (matches nn.Conv2d).  Lane shifts hoisted:
        # one shifted copy per (channel, dx), then K lane-aligned loads at
        # sublane offsets.  Each tap is an SMEM scalar times an (H, W) tile.
        acc = jnp.zeros((h, w), jnp.float32)
        for c2 in range(2):
            for dx in range(k):
                shift_ref[:, pl.ds(0, w)] = pad_ref[c2, :, pl.ds(dx, w)]
                for dy in range(k):
                    wt = w_ref[c2 * k * k + dy * k + dx]
                    acc = acc + wt * shift_ref[pl.ds(dy, h), pl.ds(0, w)]

        o_ref[0, 0] = jax.nn.sigmoid(acc).astype(o_ref.dtype)


def _pick_c_tile(c, h, w, itemsize, budget_bytes=2 << 20):
    """Largest divisor of C whose (c_tile, H, W) input block fits the budget."""
    per_plane = max(1, h * w * itemsize)
    ct = max(1, min(c, budget_bytes // per_plane))
    while c % ct:
        ct -= 1
    return ct


def spatial_attention(x, weight, *, c_tile=None):
    """x: (N, C, H, W); weight: (1, 2, K, K) Conv2d(2, 1, K, bias=False) weight."""
    n, c, h, w = x.shape
    assert weight.shape[:2] == (1, 2)
    k = weight.shape[2]
    assert k in (3, 7) and weight.shape[3] == k
    pad = k // 2

    if c_tile is None:
        c_tile = _pick_c_tile(c, h, w, x.dtype.itemsize)
    assert c % c_tile == 0, "channel tile must divide C"
    n_ct = c // c_tile

    # Fold the channel-mean's 1/C (true C, not C_tile) into the avg-channel
    # conv taps — free at trace time, saves a vector multiply per image.
    w2 = weight.astype(jnp.float32).reshape(2, k * k)
    w2 = w2.at[0].multiply(1.0 / c)
    w_flat = w2.reshape(-1)                                 # (2*K*K,) SMEM scalars

    hp = h + 2 * pad
    wpad = _round_up(w + 2 * pad, 128)                      # lane-dense padded plane
    wq = _round_up(w, 128)                                  # lane-dense shift buffer

    kernel = functools.partial(_spatial_attention_kernel,
                               h=h, w=w, k=k, pad=pad, c_tile=c_tile)
    return pl.pallas_call(
        kernel,
        grid=(n, n_ct),
        in_specs=[
            pl.BlockSpec((1, c_tile, h, w), lambda b, ci: (b, ci, 0, 0)),
            pl.BlockSpec(memory_space=pltpu.MemorySpace.SMEM),
        ],
        out_specs=pl.BlockSpec((1, 1, h, w), lambda b, ci: (b, 0, 0, 0)),
        out_shape=jax.ShapeDtypeStruct((n, 1, h, w), x.dtype),
        scratch_shapes=[
            pltpu.VMEM((h, w), jnp.float32),                # running sum
            pltpu.VMEM((h, w), jnp.float32),                # running max
            pltpu.VMEM((2, hp, wpad), jnp.float32),         # padded conv input
            pltpu.VMEM((hp, wq), jnp.float32),              # per-dx shifted copy
        ],
        compiler_params=pltpu.CompilerParams(
            dimension_semantics=("parallel", "arbitrary"),
            vmem_limit_bytes=32 * 1024 * 1024),
    )(x, w_flat)


def _reference(x, weight):
    """Pure-JAX reference matching the PyTorch module's forward."""
    avg = jnp.mean(x, axis=1, keepdims=True)
    mx = jnp.max(x, axis=1, keepdims=True)
    xc = jnp.concatenate([avg, mx], axis=1)                 # (N, 2, H, W)
    pad = weight.shape[2] // 2
    out = jax.lax.conv_general_dilated(
        xc, weight, window_strides=(1, 1),
        padding=((pad, pad), (pad, pad)),
        dimension_numbers=("NCHW", "OIHW", "NCHW"),
        precision=jax.lax.Precision.HIGHEST)
    return jax.nn.sigmoid(out)


if __name__ == "__main__":
    key = jax.random.PRNGKey(0)
    k_x, k_w = jax.random.split(key)

    N, C, H, W = 2, 4, 16, 16
    K = 7
    x = jax.random.normal(k_x, (N, C, H, W), dtype=jnp.float32)

    # Conv2d(2, 1, 7, bias=False) default init ~ U(-b, b), b = 1/sqrt(fan_in).
    bound = 1.0 / (2 * K * K) ** 0.5
    weight = jax.random.uniform(k_w, (1, 2, K, K), jnp.float32, -bound, bound)

    # c_tile=2 forces two channel-grid steps so the accumulation path is exercised.
    out = spatial_attention(x, weight, c_tile=2)
    out = jax.block_until_ready(out)

    ref = _reference(x, weight)
    assert out.shape == (N, 1, H, W)
    assert jnp.allclose(out, ref, atol=1e-5, rtol=1e-5), (
        float(jnp.max(jnp.abs(out - ref))))

    print("KERNEL_OK")
</pallas_src>

<mosaic_0001>
module attributes {stable_mosaic.version = 11 : i64} {
  func.func @_spatial_attention_kernel(%arg0: i32, %arg1: i32, %arg2: memref<1x2x16x16xf32, #tpu.memory_space<vmem>>, %arg3: memref<98xf32, #tpu.memory_space<smem>>, %arg4: memref<1x1x16x16xf32, #tpu.memory_space<vmem>>, %arg5: memref<16x16xf32, #tpu.memory_space<vmem>>, %arg6: memref<16x16xf32, #tpu.memory_space<vmem>>, %arg7: memref<2x22x128xf32, #tpu.memory_space<vmem>>, %arg8: memref<22x128xf32, #tpu.memory_space<vmem>>) attributes {dimension_semantics = [#tpu.dimension_semantics<parallel>, #tpu.dimension_semantics<arbitrary>], iteration_bounds = array<i64: 2, 2>, scalar_prefetch = 0 : i64, scratch_operands = 4 : i64, tpu.core_type = #tpu.core_type<tc>, window_params = [{transform_indices = @transform_0, window_bounds = array<i64: 1, 2, 16, 16>}, {transform_indices = @transform_1, window_bounds = array<i64: 98>}, {transform_indices = @transform_2, window_bounds = array<i64: 1, 1, 16, 16>}]} {
    %c0_i32 = arith.constant 0 : i32
    %0 = arith.cmpi eq, %arg1, %c0_i32 : i32
    %1 = arith.extui %0 : i1 to i32
    %c0_i32_0 = arith.constant 0 : i32
    %2 = arith.cmpi ne, %1, %c0_i32_0 : i32
    scf.if %2 {
      %cst = arith.constant 0.000000e+00 : f32
      %18 = vector.broadcast %cst : f32 to vector<16x16xf32>
      %c0_16 = arith.constant 0 : index
      %c0_17 = arith.constant 0 : index
      %19 = vector.load %arg5[%c0_16, %c0_17] : memref<16x16xf32, #tpu.memory_space<vmem>>, vector<16x16xf32>
      tpu.vector_store %arg5[%c0_16, %c0_17], %18 {strides = array<i32>} : memref<16x16xf32, #tpu.memory_space<vmem>>, vector<16x16xf32>,
      %cst_18 = arith.constant 0xFF800000 : f32
      %20 = vector.broadcast %cst_18 : f32 to vector<16x16xf32>
      %c0_19 = arith.constant 0 : index
      %c0_20 = arith.constant 0 : index
      %21 = vector.load %arg6[%c0_19, %c0_20] : memref<16x16xf32, #tpu.memory_space<vmem>>, vector<16x16xf32>
      tpu.vector_store %arg6[%c0_19, %c0_20], %20 {strides = array<i32>} : memref<16x16xf32, #tpu.memory_space<vmem>>, vector<16x16xf32>,
    } else {
    }
    %c0 = arith.constant 0 : index
    %c0_1 = arith.constant 0 : index
    %3 = vector.load %arg5[%c0, %c0_1] : memref<16x16xf32, #tpu.memory_space<vmem>>, vector<16x16xf32>
    %c0_2 = arith.constant 0 : index
    %c0_3 = arith.constant 0 : index
    %4 = vector.load %arg6[%c0_2, %c0_3] : memref<16x16xf32, #tpu.memory_space<vmem>>, vector<16x16xf32>
    %c0_4 = arith.constant 0 : index
    %c0_5 = arith.constant 0 : index
    %c0_6 = arith.constant 0 : index
    %c0_7 = arith.constant 0 : index
    %5 = vector.load %arg2[%c0_4, %c0_5, %c0_6, %c0_7] : memref<1x2x16x16xf32, #tpu.memory_space<vmem>>, vector<1x1x16x16xf32>
    %6 = vector.shape_cast %5 : vector<1x1x16x16xf32> to vector<16x16xf32>
    %7 = arith.addf %3, %6 : vector<16x16xf32>
    %8 = arith.maximumf %4, %6 : vector<16x16xf32>
    %c0_8 = arith.constant 0 : index
    %c1 = arith.constant 1 : index
    %c0_9 = arith.constant 0 : index
    %c0_10 = arith.constant 0 : index
    %9 = vector.load %arg2[%c0_8, %c1, %c0_9, %c0_10] : memref<1x2x16x16xf32, #tpu.memory_space<vmem>>, vector<1x1x16x16xf32>
    %10 = vector.shape_cast %9 : vector<1x1x16x16xf32> to vector<16x16xf32>
    %11 = arith.addf %7, %10 : vector<16x16xf32>
    %12 = arith.maximumf %8, %10 : vector<16x16xf32>
    %c0_11 = arith.constant 0 : index
    %c0_12 = arith.constant 0 : index
    %13 = vector.load %arg5[%c0_11, %c0_12] : memref<16x16xf32, #tpu.memory_space<vmem>>, vector<16x16xf32>
    tpu.vector_store %arg5[%c0_11, %c0_12], %11 {strides = array<i32>} : memref<16x16xf32, #tpu.memory_space<vmem>>, vector<16x16xf32>,
    %c0_13 = arith.constant 0 : index
    %c0_14 = arith.constant 0 : index
    %14 = vector.load %arg6[%c0_13, %c0_14] : memref<16x16xf32, #tpu.memory_space<vmem>>, vector<16x16xf32>
    tpu.vector_store %arg6[%c0_13, %c0_14], %12 {strides = array<i32>} : memref<16x16xf32, #tpu.memory_space<vmem>>, vector<16x16xf32>,
    %c1_i32 = arith.constant 1 : i32
    %15 = arith.cmpi eq, %arg1, %c1_i32 : i32
    %16 = arith.extui %15 : i1 to i32
    %c0_i32_15 = arith.constant 0 : i32
    %17 = arith.cmpi ne, %16, %c0_i32_15 : i32
    scf.if %17 {
      %cst = arith.constant 0.000000e+00 : f32
      %18 = vector.broadcast %cst : f32 to vector<3x128xf32>
      %c0_16 = arith.constant 0 : index
      %c0_17 = arith.constant 0 : index
      %c0_18 = arith.constant 0 : index
      %19 = vector.load %arg7[%c0_16, %c0_17, %c0_18] : memref<2x22x128xf32, #tpu.memory_space<vmem>>, vector<1x3x128xf32>
      %20 = vector.shape_cast %19 : vector<1x3x128xf32> to vector<3x128xf32>
      %21 = vector.shape_cast %18 : vector<3x128xf32> to vector<1x3x128xf32>
      tpu.vector_store %arg7[%c0_16, %c0_17, %c0_18], %21 {strides = array<i32>} : memref<2x22x128xf32, #tpu.memory_space<vmem>>, vector<1x3x128xf32>,
      %cst_19 = arith.constant 0.000000e+00 : f32
      %22 = vector.broadcast %cst_19 : f32 to vector<3x128xf32>
      %c0_20 = arith.constant 0 : index
      %c19 = arith.constant 19 : index
      %c0_21 = arith.constant 0 : index
      %23 = vector.load %arg7[%c0_20, %c19, %c0_21] : memref<2x22x128xf32, #tpu.memory_space<vmem>>, vector<1x3x128xf32>
      %24 = vector.shape_cast %23 : vector<1x3x128xf32> to vector<3x128xf32>
      %25 = vector.shape_cast %22 : vector<3x128xf32> to vector<1x3x128xf32>
      tpu.vector_store %arg7[%c0_20, %c19, %c0_21], %25 {strides = array<i32>} : memref<2x22x128xf32, #tpu.memory_space<vmem>>, vector<1x3x128xf32>,
      %cst_22 = arith.constant 0.000000e+00 : f32
      %26 = vector.broadcast %cst_22 : f32 to vector<16x3xf32>
      %c0_23 = arith.constant 0 : index
      %c3 = arith.constant 3 : index
      %c0_24 = arith.constant 0 : index
      %27 = vector.load %arg7[%c0_23, %c3, %c0_24] : memref<2x22x128xf32, #tpu.memory_space<vmem>>, vector<1x16x3xf32>
      %28 = vector.shape_cast %27 : vector<1x16x3xf32> to vector<16x3xf32>
      %29 = vector.shape_cast %26 : vector<16x3xf32> to vector<1x16x3xf32>
      tpu.vector_store %arg7[%c0_23, %c3, %c0_24], %29 {strides = array<i32>} : memref<2x22x128xf32, #tpu.memory_space<vmem>>, vector<1x16x3xf32>,
      %cst_25 = arith.constant 0.000000e+00 : f32
      %30 = vector.broadcast %cst_25 : f32 to vector<16x109xf32>
      %c0_26 = arith.constant 0 : index
      %c3_27 = arith.constant 3 : index
      %c19_28 = arith.constant 19 : index
      %31 = vector.load %arg7[%c0_26, %c3_27, %c19_28] : memref<2x22x128xf32, #tpu.memory_space<vmem>>, vector<1x16x109xf32>
      %32 = vector.shape_cast %31 : vector<1x16x109xf32> to vector<16x109xf32>
      %33 = vector.shape_cast %30 : vector<16x109xf32> to vector<1x16x109xf32>
      tpu.vector_store %arg7[%c0_26, %c3_27, %c19_28], %33 {strides = array<i32>} : memref<2x22x128xf32, #tpu.memory_space<vmem>>, vector<1x16x109xf32>,
      %cst_29 = arith.constant 0.000000e+00 : f32
      %34 = vector.broadcast %cst_29 : f32 to vector<3x128xf32>
      %c1_30 = arith.constant 1 : index
      %c0_31 = arith.constant 0 : index
      %c0_32 = arith.constant 0 : index
      %35 = vector.load %arg7[%c1_30, %c0_31, %c0_32] : memref<2x22x128xf32, #tpu.memory_space<vmem>>, vector<1x3x128xf32>
      %36 = vector.shape_cast %35 : vector<1x3x128xf32> to vector<3x128xf32>
      %37 = vector.shape_cast %34 : vector<3x128xf32> to vector<1x3x128xf32>
      tpu.vector_store %arg7[%c1_30, %c0_31, %c0_32], %37 {strides = array<i32>} : memref<2x22x128xf32, #tpu.memory_space<vmem>>, vector<1x3x128xf32>,
      %cst_33 = arith.constant 0.000000e+00 : f32
      %38 = vector.broadcast %cst_33 : f32 to vector<3x128xf32>
      %c1_34 = arith.constant 1 : index
      %c19_35 = arith.constant 19 : index
      %c0_36 = arith.constant 0 : index
      %39 = vector.load %arg7[%c1_34, %c19_35, %c0_36] : memref<2x22x128xf32, #tpu.memory_space<vmem>>, vector<1x3x128xf32>
      %40 = vector.shape_cast %39 : vector<1x3x128xf32> to vector<3x128xf32>
      %41 = vector.shape_cast %38 : vector<3x128xf32> to vector<1x3x128xf32>
      tpu.vector_store %arg7[%c1_34, %c19_35, %c0_36], %41 {strides = array<i32>} : memref<2x22x128xf32, #tpu.memory_space<vmem>>, vector<1x3x128xf32>,
      %cst_37 = arith.constant 0.000000e+00 : f32
      %42 = vector.broadcast %cst_37 : f32 to vector<16x3xf32>
      %c1_38 = arith.constant 1 : index
      %c3_39 = arith.constant 3 : index
      %c0_40 = arith.constant 0 : index
      %43 = vector.load %arg7[%c1_38, %c3_39, %c0_40] : memref<2x22x128xf32, #tpu.memory_space<vmem>>, vector<1x16x3xf32>
      %44 = vector.shape_cast %43 : vector<1x16x3xf32> to vector<16x3xf32>
      %45 = vector.shape_cast %42 : vector<16x3xf32> to vector<1x16x3xf32>
      tpu.vector_store %arg7[%c1_38, %c3_39, %c0_40], %45 {strides = array<i32>} : memref<2x22x128xf32, #tpu.memory_space<vmem>>, vector<1x16x3xf32>,
      %cst_41 = arith.constant 0.000000e+00 : f32
      %46 = vector.broadcast %cst_41 : f32 to vector<16x109xf32>
      %c1_42 = arith.constant 1 : index
      %c3_43 = arith.constant 3 : index
      %c19_44 = arith.constant 19 : index
      %47 = vector.load %arg7[%c1_42, %c3_43, %c19_44] : memref<2x22x128xf32, #tpu.memory_space<vmem>>, vector<1x16x109xf32>
      %48 = vector.shape_cast %47 : vector<1x16x109xf32> to vector<16x109xf32>
      %49 = vector.shape_cast %46 : vector<16x109xf32> to vector<1x16x109xf32>
      tpu.vector_store %arg7[%c1_42, %c3_43, %c19_44], %49 {strides = array<i32>} : memref<2x22x128xf32, #tpu.memory_space<vmem>>, vector<1x16x109xf32>,
      %c0_45 = arith.constant 0 : index
      %c0_46 = arith.constant 0 : index
      %50 = vector.load %arg5[%c0_45, %c0_46] : memref<16x16xf32, #tpu.memory_space<vmem>>, vector<16x16xf32>
      %c0_47 = arith.constant 0 : index
      %c3_48 = arith.constant 3 : index
      %c3_49 = arith.constant 3 : index
      %51 = vector.load %arg7[%c0_47, %c3_48, %c3_49] : memref<2x22x128xf32, #tpu.memory_space<vmem>>, vector<1x16x16xf32>
      %52 = vector.shape_cast %51 : vector<1x16x16xf32> to vector<16x16xf32>
      %53 = vector.shape_cast %50 : vector<16x16xf32> to vector<1x16x16xf32>
      tpu.vector_store %arg7[%c0_47, %c3_48, %c3_49], %53 {strides = array<i32>} : memref<2x22x128xf32, #tpu.memory_space<vmem>>, vector<1x16x16xf32>,
      %c0_50 = arith.constant 0 : index
      %c0_51 = arith.constant 0 : index
      %54 = vector.load %arg6[%c0_50, %c0_51] : memref<16x16xf32, #tpu.memory_space<vmem>>, vector<16x16xf32>
      %c1_52 = arith.constant 1 : index
      %c3_53 = arith.constant 3 : index
      %c3_54 = arith.constant 3 : index
      %55 = vector.load %arg7[%c1_52, %c3_53, %c3_54] : memref<2x22x128xf32, #tpu.memory_space<vmem>>, vector<1x16x16xf32>
      %56 = vector.shape_cast %55 : vector<1x16x16xf32> to vector<16x16xf32>
      %57 = vector.shape_cast %54 : vector<16x16xf32> to vector<1x16x16xf32>
      tpu.vector_store %arg7[%c1_52, %c3_53, %c3_54], %57 {strides = array<i32>} : memref<2x22x128xf32, #tpu.memory_space<vmem>>, vector<1x16x16xf32>,
      %cst_55 = arith.constant 0.000000e+00 : f32
      %58 = vector.broadcast %cst_55 : f32 to vector<16x16xf32>
      %c0_56 = arith.constant 0 : index
      %c0_57 = arith.constant 0 : index
      %c0_58 = arith.constant 0 : index
      %59 = vector.load %arg7[%c0_56, %c0_57, %c0_58] : memref<2x22x128xf32, #tpu.memory_space<vmem>>, vector<1x22x16xf32>
      %60 = vector.shape_cast %59 : vector<1x22x16xf32> to vector<22x16xf32>
      %c0_59 = arith.constant 0 : index
      %c0_60 = arith.constant 0 : index
      %61 = vector.load %arg8[%c0_59, %c0_60] : memref<22x128xf32, #tpu.memory_space<vmem>>, vector<22x16xf32>
      tpu.vector_store %arg8[%c0_59, %c0_60], %60 {strides = array<i32>} : memref<22x128xf32, #tpu.memory_space<vmem>>, vector<22x16xf32>,
      %c0_61 = arith.constant 0 : index
      %62 = memref.load %arg3[%c0_61] : memref<98xf32, #tpu.memory_space<smem>>
      %c0_62 = arith.constant 0 : index
      %c0_63 = arith.constant 0 : index
      %63 = vector.load %arg8[%c0_62, %c0_63] : memref<22x128xf32, #tpu.memory_space<vmem>>, vector<16x16xf32>
      %64 = vector.broadcast %62 : f32 to vector<16x16xf32>
      %65 = arith.mulf %64, %63 : vector<16x16xf32>
      %66 = arith.addf %58, %65 : vector<16x16xf32>
      %c7 = arith.constant 7 : index
      %67 = memref.load %arg3[%c7] : memref<98xf32, #tpu.memory_space<smem>>
      %c1_64 = arith.constant 1 : index
      %c0_65 = arith.constant 0 : index
      %68 = vector.load %arg8[%c1_64, %c0_65] : memref<22x128xf32, #tpu.memory_space<vmem>>, vector<16x16xf32>
      %69 = vector.broadcast %67 : f32 to vector<16x16xf32>
      %70 = arith.mulf %69, %68 : vector<16x16xf32>
      %71 = arith.addf %66, %70 : vector<16x16xf32>
      %c14 = arith.constant 14 : index
      %72 = memref.load %arg3[%c14] : memref<98xf32, #tpu.memory_space<smem>>
      %c2 = arith.constant 2 : index
      %c0_66 = arith.constant 0 : index
      %73 = vector.load %arg8[%c2, %c0_66] : memref<22x128xf32, #tpu.memory_space<vmem>>, vector<16x16xf32>
      %74 = vector.broadcast %72 : f32 to vector<16x16xf32>
      %75 = arith.mulf %74, %73 : vector<16x16xf32>
      %76 = arith.addf %71, %75 : vector<16x16xf32>
      %c21 = arith.constant 21 : index
      %77 = memref.load %arg3[%c21] : memref<98xf32, #tpu.memory_space<smem>>
      %c3_67 = arith.constant 3 : index
      %c0_68 = arith.constant 0 : index
      %78 = vector.load %arg8[%c3_67, %c0_68] : memref<22x128xf32, #tpu.memory_space<vmem>>, vector<16x16xf32>
      %79 = vector.broadcast %77 : f32 to vector<16x16xf32>
      %80 = arith.mulf %79, %78 : vector<16x16xf32>
      %81 = arith.addf %76, %80 : vector<16x16xf32>
      %c28 = arith.constant 28 : index
      %82 = memref.load %arg3[%c28] : memref<98xf32, #tpu.memory_space<smem>>
      %c4 = arith.constant 4 : index
      %c0_69 = arith.constant 0 : index
      %83 = vector.load %arg8[%c4, %c0_69] : memref<22x128xf32, #tpu.memory_space<vmem>>, vector<16x16xf32>
      %84 = vector.broadcast %82 : f32 to vector<16x16xf32>
      %85 = arith.mulf %84, %83 : vector<16x16xf32>
      %86 = arith.addf %81, %85 : vector<16x16xf32>
      %c35 = arith.constant 35 : index
      %87 = memref.load %arg3[%c35] : memref<98xf32, #tpu.memory_space<smem>>
      %c5 = arith.constant 5 : index
      %c0_70 = arith.constant 0 : index
      %88 = vector.load %arg8[%c5, %c0_70] : memref<22x128xf32, #tpu.memory_space<vmem>>, vector<16x16xf32>
      %89 = vector.broadcast %87 : f32 to vector<16x16xf32>
      %90 = arith.mulf %89, %88 : vector<16x16xf32>
      %91 = arith.addf %86, %90 : vector<16x16xf32>
      %c42 = arith.constant 42 : index
      %92 = memref.load %arg3[%c42] : memref<98xf32, #tpu.memory_space<smem>>
      %c6 = arith.constant 6 : index
      %c0_71 = arith.constant 0 : index
      %93 = vector.load %arg8[%c6, %c0_71] : memref<22x128xf32, #tpu.memory_space<vmem>>, vector<16x16xf32>
      %94 = vector.broadcast %92 : f32 to vector<16x16xf32>
      %95 = arith.mulf %94, %93 : vector<16x16xf32>
      %96 = arith.addf %91, %95 : vector<16x16xf32>
      %c0_72 = arith.constant 0 : index
      %c0_73 = arith.constant 0 : index
      %c1_74 = arith.constant 1 : index
      %97 = vector.load %arg7[%c0_72, %c0_73, %c1_74] : memref<2x22x128xf32, #tpu.memory_space<vmem>>, vector<1x22x16xf32>
      %98 = vector.shape_cast %97 : vector<1x22x16xf32> to vector<22x16xf32>
      %c0_75 = arith.constant 0 : index
      %c0_76 = arith.constant 0 : index
      %99 = vector.load %arg8[%c0_75, %c0_76] : memref<22x128xf32, #tpu.memory_space<vmem>>, vector<22x16xf32>
      tpu.vector_store %arg8[%c0_75, %c0_76], %98 {strides = array<i32>} : memref<22x128xf32, #tpu.memory_space<vmem>>, vector<22x16xf32>,
      %c1_77 = arith.constant 1 : index
      %100 = memref.load %arg3[%c1_77] : memref<98xf32, #tpu.memory_space<smem>>
      %c0_78 = arith.constant 0 : index
      %c0_79 = arith.constant 0 : index
      %101 = vector.load %arg8[%c0_78, %c0_79] : memref<22x128xf32, #tpu.memory_space<vmem>>, vector<16x16xf32>
      %102 = vector.broadcast %100 : f32 to vector<16x16xf32>
      %103 = arith.mulf %102, %101 : vector<16x16xf32>
      %104 = arith.addf %96, %103 : vector<16x16xf32>
      %c8 = arith.constant 8 : index
      %105 = memref.load %arg3[%c8] : memref<98xf32, #tpu.memory_space<smem>>
      %c1_80 = arith.constant 1 : index
      %c0_81 = arith.constant 0 : index
      %106 = vector.load %arg8[%c1_80, %c0_81] : memref<22x128xf32, #tpu.memory_space<vmem>>, vector<16x16xf32>
      %107 = vector.broadcast %105 : f32 to vector<16x16xf32>
      %108 = arith.mulf %107, %106 : vector<16x16xf32>
      %109 = arith.addf %104, %108 : vector<16x16xf32>
      %c15 = arith.constant 15 : index
      %110 = memref.load %arg3[%c15] : memref<98xf32, #tpu.memory_space<smem>>
      %c2_82 = arith.constant 2 : index
      %c0_83 = arith.constant 0 : index
      %111 = vector.load %arg8[%c2_82, %c0_83] : memref<22x128xf32, #tpu.memory_space<vmem>>, vector<16x16xf32>
      %112 = vector.broadcast %110 : f32 to vector<16x16xf32>
      %113 = arith.mulf %112, %111 : vector<16x16xf32>
      %114 = arith.addf %109, %113 : vector<16x16xf32>
      %c22 = arith.constant 22 : index
      %115 = memref.load %arg3[%c22] : memref<98xf32, #tpu.memory_space<smem>>
      %c3_84 = arith.constant 3 : index
      %c0_85 = arith.constant 0 : index
      %116 = vector.load %arg8[%c3_84, %c0_85] : memref<22x128xf32, #tpu.memory_space<vmem>>, vector<16x16xf32>
      %117 = vector.broadcast %115 : f32 to vector<16x16xf32>
      %118 = arith.mulf %117, %116 : vector<16x16xf32>
      %119 = arith.addf %114, %118 : vector<16x16xf32>
      %c29 = arith.constant 29 : index
      %120 = memref.load %arg3[%c29] : memref<98xf32, #tpu.memory_space<smem>>
      %c4_86 = arith.constant 4 : index
      %c0_87 = arith.constant 0 : index
      %121 = vector.load %arg8[%c4_86, %c0_87] : memref<22x128xf32, #tpu.memory_space<vmem>>, vector<16x16xf32>
      %122 = vector.broadcast %120 : f32 to vector<16x16xf32>
      %123 = arith.mulf %122, %121 : vector<16x16xf32>
      %124 = arith.addf %119, %123 : vector<16x16xf32>
      %c36 = arith.constant 36 : index
      %125 = memref.load %arg3[%c36] : memref<98xf32, #tpu.memory_space<smem>>
      %c5_88 = arith.constant 5 : index
      %c0_89 = arith.constant 0 : index
      %126 = vector.load %arg8[%c5_88, %c0_89] : memref<22x128xf32, #tpu.memory_space<vmem>>, vector<16x16xf32>
      %127 = vector.broadcast %125 : f32 to vector<16x16xf32>
      %128 = arith.mulf %127, %126 : vector<16x16xf32>
      %129 = arith.addf %124, %128 : vector<16x16xf32>
      %c43 = arith.constant 43 : index
      %130 = memref.load %arg3[%c43] : memref<98xf32, #tpu.memory_space<smem>>
      %c6_90 = arith.constant 6 : index
      %c0_91 = arith.constant 0 : index
      %131 = vector.load %arg8[%c6_90, %c0_91] : memref<22x128xf32, #tpu.memory_space<vmem>>, vector<16x16xf32>
      %132 = vector.broadcast %130 : f32 to vector<16x16xf32>
      %133 = arith.mulf %132, %131 : vector<16x16xf32>
      %134 = arith.addf %129, %133 : vector<16x16xf32>
      %c0_92 = arith.constant 0 : index
      %c0_93 = arith.constant 0 : index
      %c2_94 = arith.constant 2 : index
      %135 = vector.load %arg7[%c0_92, %c0_93, %c2_94] : memref<2x22x128xf32, #tpu.memory_space<vmem>>, vector<1x22x16xf32>
      %136 = vector.shape_cast %135 : vector<1x22x16xf32> to vector<22x16xf32>
      %c0_95 = arith.constant 0 : index
      %c0_96 = arith.constant 0 : index
      %137 = vector.load %arg8[%c0_95, %c0_96] : memref<22x128xf32, #tpu.memory_space<vmem>>, vector<22x16xf32>
      tpu.vector_store %arg8[%c0_95, %c0_96], %136 {strides = array<i32>} : memref<22x128xf32, #tpu.memory_space<vmem>>, vector<22x16xf32>,
      %c2_97 = arith.constant 2 : index
      %138 = memref.load %arg3[%c2_97] : memref<98xf32, #tpu.memory_space<smem>>
      %c0_98 = arith.constant 0 : index
      %c0_99 = arith.constant 0 : index
      %139 = vector.load %arg8[%c0_98, %c0_99] : memref<22x128xf32, #tpu.memory_space<vmem>>, vector<16x16xf32>
      %140 = vector.broadcast %138 : f32 to vector<16x16xf32>
      %141 = arith.mulf %140, %139 : vector<16x16xf32>
      %142 = arith.addf %134, %141 : vector<16x16xf32>
      %c9 = arith.constant 9 : index
      %143 = memref.load %arg3[%c9] : memref<98xf32, #tpu.memory_space<smem>>
      %c1_100 = arith.constant 1 : index
      %c0_101 = arith.constant 0 : index
      %144 = vector.load %arg8[%c1_100, %c0_101] : memref<22x128xf32, #tpu.memory_space<vmem>>, vector<16x16xf32>
      %145 = vector.broadcast %143 : f32 to vector<16x16xf32>
      %146 = arith.mulf %145, %144 : vector<16x16xf32>
      %147 = arith.addf %142, %146 : vector<16x16xf32>
      %c16 = arith.constant 16 : index
      %148 = memref.load %arg3[%c16] : memref<98xf32, #tpu.memory_space<smem>>
      %c2_102 = arith.constant 2 : index
      %c0_103 = arith.constant 0 : index
      %149 = vector.load %arg8[%c2_102, %c0_103] : memref<22x128xf32, #tpu.memory_space<vmem>>, vector<16x16xf32>
      %150 = vector.broadcast %148 : f32 to vector<16x16xf32>
      %151 = arith.mulf %150, %149 : vector<16x16xf32>
      %152 = arith.addf %147, %151 : vector<16x16xf32>
      %c23 = arith.constant 23 : index
      %153 = memref.load %arg3[%c23] : memref<98xf32, #tpu.memory_space<smem>>
      %c3_104 = arith.constant 3 : index
      %c0_105 = arith.constant 0 : index
      %154 = vector.load %arg8[%c3_104, %c0_105] : memref<22x128xf32, #tpu.memory_space<vmem>>, vector<16x16xf32>
      %155 = vector.broadcast %153 : f32 to vector<16x16xf32>
      %156 = arith.mulf %155, %154 : vector<16x16xf32>
      %157 = arith.addf %152, %156 : vector<16x16xf32>
      %c30 = arith.constant 30 : index
      %158 = memref.load %arg3[%c30] : memref<98xf32, #tpu.memory_space<smem>>
      %c4_106 = arith.constant 4 : index
      %c0_107 = arith.constant 0 : index
      %159 = vector.load %arg8[%c4_106, %c0_107] : memref<22x128xf32, #tpu.memory_space<vmem>>, vector<16x16xf32>
      %160 = vector.broadcast %158 : f32 to vector<16x16xf32>
      %161 = arith.mulf %160, %159 : vector<16x16xf32>
      %162 = arith.addf %157, %161 : vector<16x16xf32>
      %c37 = arith.constant 37 : index
      %163 = memref.load %arg3[%c37] : memref<98xf32, #tpu.memory_space<smem>>
      %c5_108 = arith.constant 5 : index
      %c0_109 = arith.constant 0 : index
      %164 = vector.load %arg8[%c5_108, %c0_109] : memref<22x128xf32, #tpu.memory_space<vmem>>, vector<16x16xf32>
      %165 = vector.broadcast %163 : f32 to vector<16x16xf32>
      %166 = arith.mulf %165, %164 : vector<16x16xf32>
      %167 = arith.addf %162, %166 : vector<16x16xf32>
      %c44 = arith.constant 44 : index
      %168 = memref.load %arg3[%c44] : memref<98xf32, #tpu.memory_space<smem>>
      %c6_110 = arith.constant 6 : index
      %c0_111 = arith.constant 0 : index
      %169 = vector.load %arg8[%c6_110, %c0_111] : memref<22x128xf32, #tpu.memory_space<vmem>>, vector<16x16xf32>
      %170 = vector.broadcast %168 : f32 to vector<16x16xf32>
      %171 = arith.mulf %170, %169 : vector<16x16xf32>
      %172 = arith.addf %167, %171 : vector<16x16xf32>
      %c0_112 = arith.constant 0 : index
      %c0_113 = arith.constant 0 : index
      %c3_114 = arith.constant 3 : index
      %173 = vector.load %arg7[%c0_112, %c0_113, %c3_114] : memref<2x22x128xf32, #tpu.memory_space<vmem>>, vector<1x22x16xf32>
      %174 = vector.shape_cast %173 : vector<1x22x16xf32> to vector<22x16xf32>
      %c0_115 = arith.constant 0 : index
      %c0_116 = arith.constant 0 : index
      %175 = vector.load %arg8[%c0_115, %c0_116] : memref<22x128xf32, #tpu.memory_space<vmem>>, vector<22x16xf32>
      tpu.vector_store %arg8[%c0_115, %c0_116], %174 {strides = array<i32>} : memref<22x128xf32, #tpu.memory_space<vmem>>, vector<22x16xf32>,
      %c3_117 = arith.constant 3 : index
      %176 = memref.load %arg3[%c3_117] : memref<98xf32, #tpu.memory_space<smem>>
      %c0_118 = arith.constant 0 : index
      %c0_119 = arith.constant 0 : index
      %177 = vector.load %arg8[%c0_118, %c0_119] : memref<22x128xf32, #tpu.memory_space<vmem>>, vector<16x16xf32>
      %178 = vector.broadcast %176 : f32 to vector<16x16xf32>
      %179 = arith.mulf %178, %177 : vector<16x16xf32>
      %180 = arith.addf %172, %179 : vector<16x16xf32>
      %c10 = arith.constant 10 : index
      %181 = memref.load %arg3[%c10] : memref<98xf32, #tpu.memory_space<smem>>
      %c1_120 = arith.constant 1 : index
      %c0_121 = arith.constant 0 : index
      %182 = vector.load %arg8[%c1_120, %c0_121] : memref<22x128xf32, #tpu.memory_space<vmem>>, vector<16x16xf32>
      %183 = vector.broadcast %181 : f32 to vector<16x16xf32>
      %184 = arith.mulf %183, %182 : vector<16x16xf32>
      %185 = arith.addf %180, %184 : vector<16x16xf32>
      %c17 = arith.constant 17 : index
      %186 = memref.load %arg3[%c17] : memref<98xf32, #tpu.memory_space<smem>>
      %c2_122 = arith.constant 2 : index
      %c0_123 = arith.constant 0 : index
      %187 = vector.load %arg8[%c2_122, %c0_123] : memref<22x128xf32, #tpu.memory_space<vmem>>, vector<16x16xf32>
      %188 = vector.broadcast %186 : f32 to vector<16x16xf32>
      %189 = arith.mulf %188, %187 : vector<16x16xf32>
      %190 = arith.addf %185, %189 : vector<16x16xf32>
      %c24 = arith.constant 24 : index
      %191 = memref.load %arg3[%c24] : memref<98xf32, #tpu.memory_space<smem>>
      %c3_124 = arith.constant 3 : index
      %c0_125 = arith.constant 0 : index
      %192 = vector.load %arg8[%c3_124, %c0_125] : memref<22x128xf32, #tpu.memory_space<vmem>>, vector<16x16xf32>
      %193 = vector.broadcast %191 : f32 to vector<16x16xf32>
      %194 = arith.mulf %193, %192 : vector<16x16xf32>
      %195 = arith.addf %190, %194 : vector<16x16xf32>
      %c31 = arith.constant 31 : index
      %196 = memref.load %arg3[%c31] : memref<98xf32, #tpu.memory_space<smem>>
      %c4_126 = arith.constant 4 : index
      %c0_127 = arith.constant 0 : index
      %197 = vector.load %arg8[%c4_126, %c0_127] : memref<22x128xf32, #tpu.memory_space<vmem>>, vector<16x16xf32>
      %198 = vector.broadcast %196 : f32 to vector<16x16xf32>
      %199 = arith.mulf %198, %197 : vector<16x16xf32>
      %200 = arith.addf %195, %199 : vector<16x16xf32>
      %c38 = arith.constant 38 : index
      %201 = memref.load %arg3[%c38] : memref<98xf32, #tpu.memory_space<smem>>
      %c5_128 = arith.constant 5 : index
      %c0_129 = arith.constant 0 : index
      %202 = vector.load %arg8[%c5_128, %c0_129] : memref<22x128xf32, #tpu.memory_space<vmem>>, vector<16x16xf32>
      %203 = vector.broadcast %201 : f32 to vector<16x16xf32>
      %204 = arith.mulf %203, %202 : vector<16x16xf32>
      %205 = arith.addf %200, %204 : vector<16x16xf32>
      %c45 = arith.constant 45 : index
      %206 = memref.load %arg3[%c45] : memref<98xf32, #tpu.memory_space<smem>>
      %c6_130 = arith.constant 6 : index
      %c0_131 = arith.constant 0 : index
      %207 = vector.load %arg8[%c6_130, %c0_131] : memref<22x128xf32, #tpu.memory_space<vmem>>, vector<16x16xf32>
      %208 = vector.broadcast %206 : f32 to vector<16x16xf32>
      %209 = arith.mulf %208, %207 : vector<16x16xf32>
      %210 = arith.addf %205, %209 : vector<16x16xf32>
      %c0_132 = arith.constant 0 : index
      %c0_133 = arith.constant 0 : index
      %c4_134 = arith.constant 4 : index
      %211 = vector.load %arg7[%c0_132, %c0_133, %c4_134] : memref<2x22x128xf32, #tpu.memory_space<vmem>>, vector<1x22x16xf32>
      %212 = vector.shape_cast %211 : vector<1x22x16xf32> to vector<22x16xf32>
      %c0_135 = arith.constant 0 : index
      %c0_136 = arith.constant 0 : index
      %213 = vector.load %arg8[%c0_135, %c0_136] : memref<22x128xf32, #tpu.memory_space<vmem>>, vector<22x16xf32>
      tpu.vector_store %arg8[%c0_135, %c0_136], %212 {strides = array<i32>} : memref<22x128xf32, #tpu.memory_space<vmem>>, vector<22x16xf32>,
      %c4_137 = arith.constant 4 : index
      %214 = memref.load %arg3[%c4_137] : memref<98xf32, #tpu.memory_space<smem>>
      %c0_138 = arith.constant 0 : index
      %c0_139 = arith.constant 0 : index
      %215 = vector.load %arg8[%c0_138, %c0_139] : memref<22x128xf32, #tpu.memory_space<vmem>>, vector<16x16xf32>
      %216 = vector.broadcast %214 : f32 to vector<16x16xf32>
      %217 = arith.mulf %216, %215 : vector<16x16xf32>
      %218 = arith.addf %210, %217 : vector<16x16xf32>
      %c11 = arith.constant 11 : index
      %219 = memref.load %arg3[%c11] : memref<98xf32, #tpu.memory_space<smem>>
      %c1_140 = arith.constant 1 : index
      %c0_141 = arith.constant 0 : index
      %220 = vector.load %arg8[%c1_140, %c0_141] : memref<22x128xf32, #tpu.memory_space<vmem>>, vector<16x16xf32>
      %221 = vector.broadcast %219 : f32 to vector<16x16xf32>
      %222 = arith.mulf %221, %220 : vector<16x16xf32>
      %223 = arith.addf %218, %222 : vector<16x16xf32>
      %c18 = arith.constant 18 : index
      %224 = memref.load %arg3[%c18] : memref<98xf32, #tpu.memory_space<smem>>
      %c2_142 = arith.constant 2 : index
      %c0_143 = arith.constant 0 : index
      %225 = vector.load %arg8[%c2_142, %c0_143] : memref<22x128xf32, #tpu.memory_space<vmem>>, vector<16x16xf32>
      %226 = vector.broadcast %224 : f32 to vector<16x16xf32>
      %227 = arith.mulf %226, %225 : vector<16x16xf32>
      %228 = arith.addf %223, %227 : vector<16x16xf32>
      %c25 = arith.constant 25 : index
      %229 = memref.load %arg3[%c25] : memref<98xf32, #tpu.memory_space<smem>>
      %c3_144 = arith.constant 3 : index
      %c0_145 = arith.constant 0 : index
      %230 = vector.load %arg8[%c3_144, %c0_145] : memref<22x128xf32, #tpu.memory_space<vmem>>, vector<16x16xf32>
      %231 = vector.broadcast %229 : f32 to vector<16x16xf32>
      %232 = arith.mulf %231, %230 : vector<16x16xf32>
      %233 = arith.addf %228, %232 : vector<16x16xf32>
      %c32 = arith.constant 32 : index
      %234 = memref.load %arg3[%c32] : memref<98xf32, #tpu.memory_space<smem>>
      %c4_146 = arith.constant 4 : index
      %c0_147 = arith.constant 0 : index
      %235 = vector.load %arg8[%c4_146, %c0_147] : memref<22x128xf32, #tpu.memory_space<vmem>>, vector<16x16xf32>
      %236 = vector.broadcast %234 : f32 to vector<16x16xf32>
      %237 = arith.mulf %236, %235 : vector<16x16xf32>
      %238 = arith.addf %233, %237 : vector<16x16xf32>
      %c39 = arith.constant 39 : index
      %239 = memref.load %arg3[%c39] : memref<98xf32, #tpu.memory_space<smem>>
      %c5_148 = arith.constant 5 : index
      %c0_149 = arith.constant 0 : index
      %240 = vector.load %arg8[%c5_148, %c0_149] : memref<22x128xf32, #tpu.memory_space<vmem>>, vector<16x16xf32>
      %241 = vector.broadcast %239 : f32 to vector<16x16xf32>
      %242 = arith.mulf %241, %240 : vector<16x16xf32>
      %243 = arith.addf %238, %242 : vector<16x16xf32>
      %c46 = arith.constant 46 : index
      %244 = memref.load %arg3[%c46] : memref<98xf32, #tpu.memory_space<smem>>
      %c6_150 = arith.constant 6 : index
      %c0_151 = arith.constant 0 : index
      %245 = vector.load %arg8[%c6_150, %c0_151] : memref<22x128xf32, #tpu.memory_space<vmem>>, vector<16x16xf32>
      %246 = vector.broadcast %244 : f32 to vector<16x16xf32>
      %247 = arith.mulf %246, %245 : vector<16x16xf32>
      %248 = arith.addf %243, %247 : vector<16x16xf32>
      %c0_152 = arith.constant 0 : index
      %c0_153 = arith.constant 0 : index
      %c5_154 = arith.constant 5 : index
      %249 = vector.load %arg7[%c0_152, %c0_153, %c5_154] : memref<2x22x128xf32, #tpu.memory_space<vmem>>, vector<1x22x16xf32>
      %250 = vector.shape_cast %249 : vector<1x22x16xf32> to vector<22x16xf32>
      %c0_155 = arith.constant 0 : index
      %c0_156 = arith.constant 0 : index
      %251 = vector.load %arg8[%c0_155, %c0_156] : memref<22x128xf32, #tpu.memory_space<vmem>>, vector<22x16xf32>
      tpu.vector_store %arg8[%c0_155, %c0_156], %250 {strides = array<i32>} : memref<22x128xf32, #tpu.memory_space<vmem>>, vector<22x16xf32>,
      %c5_157 = arith.constant 5 : index
      %252 = memref.load %arg3[%c5_157] : memref<98xf32, #tpu.memory_space<smem>>
      %c0_158 = arith.constant 0 : index
      %c0_159 = arith.constant 0 : index
      %253 = vector.load %arg8[%c0_158, %c0_159] : memref<22x128xf32, #tpu.memory_space<vmem>>, vector<16x16xf32>
      %254 = vector.broadcast %252 : f32 to vector<16x16xf32>
      %255 = arith.mulf %254, %253 : vector<16x16xf32>
      %256 = arith.addf %248, %255 : vector<16x16xf32>
      %c12 = arith.constant 12 : index
      %257 = memref.load %arg3[%c12] : memref<98xf32, #tpu.memory_space<smem>>
      %c1_160 = arith.constant 1 : index
      %c0_161 = arith.constant 0 : index
      %258 = vector.load %arg8[%c1_160, %c0_161] : memref<22x128xf32, #tpu.memory_space<vmem>>, vector<16x16xf32>
      %259 = vector.broadcast %257 : f32 to vector<16x16xf32>
      %260 = arith.mulf %259, %258 : vector<16x16xf32>
      %261 = arith.addf %256, %260 : vector<16x16xf32>
      %c19_162 = arith.constant 19 : index
      %262 = memref.load %arg3[%c19_162] : memref<98xf32, #tpu.memory_space<smem>>
      %c2_163 = arith.constant 2 : index
      %c0_164 = arith.constant 0 : index
      %263 = vector.load %arg8[%c2_163, %c0_164] : memref<22x128xf32, #tpu.memory_space<vmem>>, vector<16x16xf32>
      %264 = vector.broadcast %262 : f32 to vector<16x16xf32>
      %265 = arith.mulf %264, %263 : vector<16x16xf32>
      %266 = arith.addf %261, %265 : vector<16x16xf32>
      %c26 = arith.constant 26 : index
      %267 = memref.load %arg3[%c26] : memref<98xf32, #tpu.memory_space<smem>>
      %c3_165 = arith.constant 3 : index
      %c0_166 = arith.constant 0 : index
      %268 = vector.load %arg8[%c3_165, %c0_166] : memref<22x128xf32, #tpu.memory_space<vmem>>, vector<16x16xf32>
      %269 = vector.broadcast %267 : f32 to vector<16x16xf32>
      %270 = arith.mulf %269, %268 : vector<16x16xf32>
      %271 = arith.addf %266, %270 : vector<16x16xf32>
      %c33 = arith.constant 33 : index
      %272 = memref.load %arg3[%c33] : memref<98xf32, #tpu.memory_space<smem>>
      %c4_167 = arith.constant 4 : index
      %c0_168 = arith.constant 0 : index
      %273 = vector.load %arg8[%c4_167, %c0_168] : memref<22x128xf32, #tpu.memory_space<vmem>>, vector<16x16xf32>
      %274 = vector.broadcast %272 : f32 to vector<16x16xf32>
      %275 = arith.mulf %274, %273 : vector<16x16xf32>
      %276 = arith.addf %271, %275 : vector<16x16xf32>
      %c40 = arith.constant 40 : index
      %277 = memref.load %arg3[%c40] : memref<98xf32, #tpu.memory_space<smem>>
      %c5_169 = arith.constant 5 : index
      %c0_170 = arith.constant 0 : index
      %278 = vector.load %arg8[%c5_169, %c0_170] : memref<22x128xf32, #tpu.memory_space<vmem>>, vector<16x16xf32>
      %279 = vector.broadcast %277 : f32 to vector<16x16xf32>
      %280 = arith.mulf %279, %278 : vector<16x16xf32>
      %281 = arith.addf %276, %280 : vector<16x16xf32>
      %c47 = arith.constant 47 : index
      %282 = memref.load %arg3[%c47] : memref<98xf32, #tpu.memory_space<smem>>
      %c6_171 = arith.constant 6 : index
      %c0_172 = arith.constant 0 : index
      %283 = vector.load %arg8[%c6_171, %c0_172] : memref<22x128xf32, #tpu.memory_space<vmem>>, vector<16x16xf32>
      %284 = vector.broadcast %282 : f32 to vector<16x16xf32>
      %285 = arith.mulf %284, %283 : vector<16x16xf32>
      %286 = arith.addf %281, %285 : vector<16x16xf32>
      %c0_173 = arith.constant 0 : index
      %c0_174 = arith.constant 0 : index
      %c6_175 = arith.constant 6 : index
      %287 = vector.load %arg7[%c0_173, %c0_174, %c6_175] : memref<2x22x128xf32, #tpu.memory_space<vmem>>, vector<1x22x16xf32>
      %288 = vector.shape_cast %287 : vector<1x22x16xf32> to vector<22x16xf32>
      %c0_176 = arith.constant 0 : index
      %c0_177 = arith.constant 0 : index
      %289 = vector.load %arg8[%c0_176, %c0_177] : memref<22x128xf32, #tpu.memory_space<vmem>>, vector<22x16xf32>
      tpu.vector_store %arg8[%c0_176, %c0_177], %288 {strides = array<i32>} : memref<22x128xf32, #tpu.memory_space<vmem>>, vector<22x16xf32>,
      %c6_178 = arith.constant 6 : index
      %290 = memref.load %arg3[%c6_178] : memref<98xf32, #tpu.memory_space<smem>>
      %c0_179 = arith.constant 0 : index
      %c0_180 = arith.constant 0 : index
      %291 = vector.load %arg8[%c0_179, %c0_180] : memref<22x128xf32, #tpu.memory_space<vmem>>, vector<16x16xf32>
      %292 = vector.broadcast %290 : f32 to vector<16x16xf32>
      %293 = arith.mulf %292, %291 : vector<16x16xf32>
      %294 = arith.addf %286, %293 : vector<16x16xf32>
      %c13 = arith.constant 13 : index
      %295 = memref.load %arg3[%c13] : memref<98xf32, #tpu.memory_space<smem>>
      %c1_181 = arith.constant 1 : index
      %c0_182 = arith.constant 0 : index
      %296 = vector.load %arg8[%c1_181, %c0_182] : memref<22x128xf32, #tpu.memory_space<vmem>>, vector<16x16xf32>
      %297 = vector.broadcast %295 : f32 to vector<16x16xf32>
      %298 = arith.mulf %297, %296 : vector<16x16xf32>
      %299 = arith.addf %294, %298 : vector<16x16xf32>
      %c20 = arith.constant 20 : index
      %300 = memref.load %arg3[%c20] : memref<98xf32, #tpu.memory_space<smem>>
      %c2_183 = arith.constant 2 : index
      %c0_184 = arith.constant 0 : index
      %301 = vector.load %arg8[%c2_183, %c0_184] : memref<22x128xf32, #tpu.memory_space<vmem>>, vector<16x16xf32>
      %302 = vector.broadcast %300 : f32 to vector<16x16xf32>
      %303 = arith.mulf %302, %301 : vector<16x16xf32>
      %304 = arith.addf %299, %303 : vector<16x16xf32>
      %c27 = arith.constant 27 : index
      %305 = memref.load %arg3[%c27] : memref<98xf32, #tpu.memory_space<smem>>
      %c3_185 = arith.constant 3 : index
      %c0_186 = arith.constant 0 : index
      %306 = vector.load %arg8[%c3_185, %c0_186] : memref<22x128xf32, #tpu.memory_space<vmem>>, vector<16x16xf32>
      %307 = vector.broadcast %305 : f32 to vector<16x16xf32>
      %308 = arith.mulf %307, %306 : vector<16x16xf32>
      %309 = arith.addf %304, %308 : vector<16x16xf32>
      %c34 = arith.constant 34 : index
      %310 = memref.load %arg3[%c34] : memref<98xf32, #tpu.memory_space<smem>>
      %c4_187 = arith.constant 4 : index
      %c0_188 = arith.constant 0 : index
      %311 = vector.load %arg8[%c4_187, %c0_188] : memref<22x128xf32, #tpu.memory_space<vmem>>, vector<16x16xf32>
      %312 = vector.broadcast %310 : f32 to vector<16x16xf32>
      %313 = arith.mulf %312, %311 : vector<16x16xf32>
      %314 = arith.addf %309, %313 : vector<16x16xf32>
      %c41 = arith.constant 41 : index
      %315 = memref.load %arg3[%c41] : memref<98xf32, #tpu.memory_space<smem>>
      %c5_189 = arith.constant 5 : index
      %c0_190 = arith.constant 0 : index
      %316 = vector.load %arg8[%c5_189, %c0_190] : memref<22x128xf32, #tpu.memory_space<vmem>>, vector<16x16xf32>
      %317 = vector.broadcast %315 : f32 to vector<16x16xf32>
      %318 = arith.mulf %317, %316 : vector<16x16xf32>
      %319 = arith.addf %314, %318 : vector<16x16xf32>
      %c48 = arith.constant 48 : index
      %320 = memref.load %arg3[%c48] : memref<98xf32, #tpu.memory_space<smem>>
      %c6_191 = arith.constant 6 : index
      %c0_192 = arith.constant 0 : index
      %321 = vector.load %arg8[%c6_191, %c0_192] : memref<22x128xf32, #tpu.memory_space<vmem>>, vector<16x16xf32>
      %322 = vector.broadcast %320 : f32 to vector<16x16xf32>
      %323 = arith.mulf %322, %321 : vector<16x16xf32>
      %324 = arith.addf %319, %323 : vector<16x16xf32>
      %c1_193 = arith.constant 1 : index
      %c0_194 = arith.constant 0 : index
      %c0_195 = arith.constant 0 : index
      %325 = vector.load %arg7[%c1_193, %c0_194, %c0_195] : memref<2x22x128xf32, #tpu.memory_space<vmem>>, vector<1x22x16xf32>
      %326 = vector.shape_cast %325 : vector<1x22x16xf32> to vector<22x16xf32>
      %c0_196 = arith.constant 0 : index
      %c0_197 = arith.constant 0 : index
      %327 = vector.load %arg8[%c0_196, %c0_197] : memref<22x128xf32, #tpu.memory_space<vmem>>, vector<22x16xf32>
      tpu.vector_store %arg8[%c0_196, %c0_197], %326 {strides = array<i32>} : memref<22x128xf32, #tpu.memory_space<vmem>>, vector<22x16xf32>,
      %c49 = arith.constant 49 : index
      %328 = memref.load %arg3[%c49] : memref<98xf32, #tpu.memory_space<smem>>
      %c0_198 = arith.constant 0 : index
      %c0_199 = arith.constant 0 : index
      %329 = vector.load %arg8[%c0_198, %c0_199] : memref<22x128xf32, #tpu.memory_space<vmem>>, vector<16x16xf32>
      %330 = vector.broadcast %328 : f32 to vector<16x16xf32>
      %331 = arith.mulf %330, %329 : vector<16x16xf32>
      %332 = arith.addf %324, %331 : vector<16x16xf32>
      %c56 = arith.constant 56 : index
      %333 = memref.load %arg3[%c56] : memref<98xf32, #tpu.memory_space<smem>>
      %c1_200 = arith.constant 1 : index
      %c0_201 = arith.constant 0 : index
      %334 = vector.load %arg8[%c1_200, %c0_201] : memref<22x128xf32, #tpu.memory_space<vmem>>, vector<16x16xf32>
      %335 = vector.broadcast %333 : f32 to vector<16x16xf32>
      %336 = arith.mulf %335, %334 : vector<16x16xf32>
      %337 = arith.addf %332, %336 : vector<16x16xf32>
      %c63 = arith.constant 63 : index
      %338 = memref.load %arg3[%c63] : memref<98xf32, #tpu.memory_space<smem>>
      %c2_202 = arith.constant 2 : index
      %c0_203 = arith.constant 0 : index
      %339 = vector.load %arg8[%c2_202, %c0_203] : memref<22x128xf32, #tpu.memory_space<vmem>>, vector<16x16xf32>
      %340 = vector.broadcast %338 : f32 to vector<16x16xf32>
      %341 = arith.mulf %340, %339 : vector<16x16xf32>
      %342 = arith.addf %337, %341 : vector<16x16xf32>
      %c70 = arith.constant 70 : index
      %343 = memref.load %arg3[%c70] : memref<98xf32, #tpu.memory_space<smem>>
      %c3_204 = arith.constant 3 : index
      %c0_205 = arith.constant 0 : index
      %344 = vector.load %arg8[%c3_204, %c0_205] : memref<22x128xf32, #tpu.memory_space<vmem>>, vector<16x16xf32>
      %345 = vector.broadcast %343 : f32 to vector<16x16xf32>
      %346 = arith.mulf %345, %344 : vector<16x16xf32>
      %347 = arith.addf %342, %346 : vector<16x16xf32>
      %c77 = arith.constant 77 : index
      %348 = memref.load %arg3[%c77] : memref<98xf32, #tpu.memory_space<smem>>
      %c4_206 = arith.constant 4 : index
      %c0_207 = arith.constant 0 : index
      %349 = vector.load %arg8[%c4_206, %c0_207] : memref<22x128xf32, #tpu.memory_space<vmem>>, vector<16x16xf32>
      %350 = vector.broadcast %348 : f32 to vector<16x16xf32>
      %351 = arith.mulf %350, %349 : vector<16x16xf32>
      %352 = arith.addf %347, %351 : vector<16x16xf32>
      %c84 = arith.constant 84 : index
      %353 = memref.load %arg3[%c84] : memref<98xf32, #tpu.memory_space<smem>>
      %c5_208 = arith.constant 5 : index
      %c0_209 = arith.constant 0 : index
      %354 = vector.load %arg8[%c5_208, %c0_209] : memref<22x128xf32, #tpu.memory_space<vmem>>, vector<16x16xf32>
      %355 = vector.broadcast %353 : f32 to vector<16x16xf32>
      %356 = arith.mulf %355, %354 : vector<16x16xf32>
      %357 = arith.addf %352, %356 : vector<16x16xf32>
      %c91 = arith.constant 91 : index
      %358 = memref.load %arg3[%c91] : memref<98xf32, #tpu.memory_space<smem>>
      %c6_210 = arith.constant 6 : index
      %c0_211 = arith.constant 0 : index
      %359 = vector.load %arg8[%c6_210, %c0_211] : memref<22x128xf32, #tpu.memory_space<vmem>>, vector<16x16xf32>
      %360 = vector.broadcast %358 : f32 to vector<16x16xf32>
      %361 = arith.mulf %360, %359 : vector<16x16xf32>
      %362 = arith.addf %357, %361 : vector<16x16xf32>
      %c1_212 = arith.constant 1 : index
      %c0_213 = arith.constant 0 : index
      %c1_214 = arith.constant 1 : index
      %363 = vector.load %arg7[%c1_212, %c0_213, %c1_214] : memref<2x22x128xf32, #tpu.memory_space<vmem>>, vector<1x22x16xf32>
      %364 = vector.shape_cast %363 : vector<1x22x16xf32> to vector<22x16xf32>
      %c0_215 = arith.constant 0 : index
      %c0_216 = arith.constant 0 : index
      %365 = vector.load %arg8[%c0_215, %c0_216] : memref<22x128xf32, #tpu.memory_space<vmem>>, vector<22x16xf32>
      tpu.vector_store %arg8[%c0_215, %c0_216], %364 {strides = array<i32>} : memref<22x128xf32, #tpu.memory_space<vmem>>, vector<22x16xf32>,
      %c50 = arith.constant 50 : index
      %366 = memref.load %arg3[%c50] : memref<98xf32, #tpu.memory_space<smem>>
      %c0_217 = arith.constant 0 : index
      %c0_218 = arith.constant 0 : index
      %367 = vector.load %arg8[%c0_217, %c0_218] : memref<22x128xf32, #tpu.memory_space<vmem>>, vector<16x16xf32>
      %368 = vector.broadcast %366 : f32 to vector<16x16xf32>
      %369 = arith.mulf %368, %367 : vector<16x16xf32>
      %370 = arith.addf %362, %369 : vector<16x16xf32>
      %c57 = arith.constant 57 : index
      %371 = memref.load %arg3[%c57] : memref<98xf32, #tpu.memory_space<smem>>
      %c1_219 = arith.constant 1 : index
      %c0_220 = arith.constant 0 : index
      %372 = vector.load %arg8[%c1_219, %c0_220] : memref<22x128xf32, #tpu.memory_space<vmem>>, vector<16x16xf32>
      %373 = vector.broadcast %371 : f32 to vector<16x16xf32>
      %374 = arith.mulf %373, %372 : vector<16x16xf32>
      %375 = arith.addf %370, %374 : vector<16x16xf32>
      %c64 = arith.constant 64 : index
      %376 = memref.load %arg3[%c64] : memref<98xf32, #tpu.memory_space<smem>>
      %c2_221 = arith.constant 2 : index
      %c0_222 = arith.constant 0 : index
      %377 = vector.load %arg8[%c2_221, %c0_222] : memref<22x128xf32, #tpu.memory_space<vmem>>, vector<16x16xf32>
      %378 = vector.broadcast %376 : f32 to vector<16x16xf32>
      %379 = arith.mulf %378, %377 : vector<16x16xf32>
      %380 = arith.addf %375, %379 : vector<16x16xf32>
      %c71 = arith.constant 71 : index
      %381 = memref.load %arg3[%c71] : memref<98xf32, #tpu.memory_space<smem>>
      %c3_223 = arith.constant 3 : index
      %c0_224 = arith.constant 0 : index
      %382 = vector.load %arg8[%c3_223, %c0_224] : memref<22x128xf32, #tpu.memory_space<vmem>>, vector<16x16xf32>
      %383 = vector.broadcast %381 : f32 to vector<16x16xf32>
      %384 = arith.mulf %383, %382 : vector<16x16xf32>
      %385 = arith.addf %380, %384 : vector<16x16xf32>
      %c78 = arith.constant 78 : index
      %386 = memref.load %arg3[%c78] : memref<98xf32, #tpu.memory_space<smem>>
      %c4_225 = arith.constant 4 : index
      %c0_226 = arith.constant 0 : index
      %387 = vector.load %arg8[%c4_225, %c0_226] : memref<22x128xf32, #tpu.memory_space<vmem>>, vector<16x16xf32>
      %388 = vector.broadcast %386 : f32 to vector<16x16xf32>
      %389 = arith.mulf %388, %387 : vector<16x16xf32>
      %390 = arith.addf %385, %389 : vector<16x16xf32>
      %c85 = arith.constant 85 : index
      %391 = memref.load %arg3[%c85] : memref<98xf32, #tpu.memory_space<smem>>
      %c5_227 = arith.constant 5 : index
      %c0_228 = arith.constant 0 : index
      %392 = vector.load %arg8[%c5_227, %c0_228] : memref<22x128xf32, #tpu.memory_space<vmem>>, vector<16x16xf32>
      %393 = vector.broadcast %391 : f32 to vector<16x16xf32>
      %394 = arith.mulf %393, %392 : vector<16x16xf32>
      %395 = arith.addf %390, %394 : vector<16x16xf32>
      %c92 = arith.constant 92 : index
      %396 = memref.load %arg3[%c92] : memref<98xf32, #tpu.memory_space<smem>>
      %c6_229 = arith.constant 6 : index
      %c0_230 = arith.constant 0 : index
      %397 = vector.load %arg8[%c6_229, %c0_230] : memref<22x128xf32, #tpu.memory_space<vmem>>, vector<16x16xf32>
      %398 = vector.broadcast %396 : f32 to vector<16x16xf32>
      %399 = arith.mulf %398, %397 : vector<16x16xf32>
      %400 = arith.addf %395, %399 : vector<16x16xf32>
      %c1_231 = arith.constant 1 : index
      %c0_232 = arith.constant 0 : index
      %c2_233 = arith.constant 2 : index
      %401 = vector.load %arg7[%c1_231, %c0_232, %c2_233] : memref<2x22x128xf32, #tpu.memory_space<vmem>>, vector<1x22x16xf32>
      %402 = vector.shape_cast %401 : vector<1x22x16xf32> to vector<22x16xf32>
      %c0_234 = arith.constant 0 : index
      %c0_235 = arith.constant 0 : index
      %403 = vector.load %arg8[%c0_234, %c0_235] : memref<22x128xf32, #tpu.memory_space<vmem>>, vector<22x16xf32>
      tpu.vector_store %arg8[%c0_234, %c0_235], %402 {strides = array<i32>} : memref<22x128xf32, #tpu.memory_space<vmem>>, vector<22x16xf32>,
      %c51 = arith.constant 51 : index
      %404 = memref.load %arg3[%c51] : memref<98xf32, #tpu.memory_space<smem>>
      %c0_236 = arith.constant 0 : index
      %c0_237 = arith.constant 0 : index
      %405 = vector.load %arg8[%c0_236, %c0_237] : memref<22x128xf32, #tpu.memory_space<vmem>>, vector<16x16xf32>
      %406 = vector.broadcast %404 : f32 to vector<16x16xf32>
      %407 = arith.mulf %406, %405 : vector<16x16xf32>
      %408 = arith.addf %400, %407 : vector<16x16xf32>
      %c58 = arith.constant 58 : index
      %409 = memref.load %arg3[%c58] : memref<98xf32, #tpu.memory_space<smem>>
      %c1_238 = arith.constant 1 : index
      %c0_239 = arith.constant 0 : index
      %410 = vector.load %arg8[%c1_238, %c0_239] : memref<22x128xf32, #tpu.memory_space<vmem>>, vector<16x16xf32>
      %411 = vector.broadcast %409 : f32 to vector<16x16xf32>
      %412 = arith.mulf %411, %410 : vector<16x16xf32>
      %413 = arith.addf %408, %412 : vector<16x16xf32>
      %c65 = arith.constant 65 : index
      %414 = memref.load %arg3[%c65] : memref<98xf32, #tpu.memory_space<smem>>
      %c2_240 = arith.constant 2 : index
      %c0_241 = arith.constant 0 : index
      %415 = vector.load %arg8[%c2_240, %c0_241] : memref<22x128xf32, #tpu.memory_space<vmem>>, vector<16x16xf32>
      %416 = vector.broadcast %414 : f32 to vector<16x16xf32>
      %417 = arith.mulf %416, %415 : vector<16x16xf32>
      %418 = arith.addf %413, %417 : vector<16x16xf32>
      %c72 = arith.constant 72 : index
      %419 = memref.load %arg3[%c72] : memref<98xf32, #tpu.memory_space<smem>>
      %c3_242 = arith.constant 3 : index
      %c0_243 = arith.constant 0 : index
      %420 = vector.load %arg8[%c3_242, %c0_243] : memref<22x128xf32, #tpu.memory_space<vmem>>, vector<16x16xf32>
      %421 = vector.broadcast %419 : f32 to vector<16x16xf32>
      %422 = arith.mulf %421, %420 : vector<16x16xf32>
      %423 = arith.addf %418, %422 : vector<16x16xf32>
      %c79 = arith.constant 79 : index
      %424 = memref.load %arg3[%c79] : memref<98xf32, #tpu.memory_space<smem>>
      %c4_244 = arith.constant 4 : index
      %c0_245 = arith.constant 0 : index
      %425 = vector.load %arg8[%c4_244, %c0_245] : memref<22x128xf32, #tpu.memory_space<vmem>>, vector<16x16xf32>
      %426 = vector.broadcast %424 : f32 to vector<16x16xf32>
      %427 = arith.mulf %426, %425 : vector<16x16xf32>
      %428 = arith.addf %423, %427 : vector<16x16xf32>
      %c86 = arith.constant 86 : index
      %429 = memref.load %arg3[%c86] : memref<98xf32, #tpu.memory_space<smem>>
      %c5_246 = arith.constant 5 : index
      %c0_247 = arith.constant 0 : index
      %430 = vector.load %arg8[%c5_246, %c0_247] : memref<22x128xf32, #tpu.memory_space<vmem>>, vector<16x16xf32>
      %431 = vector.broadcast %429 : f32 to vector<16x16xf32>
      %432 = arith.mulf %431, %430 : vector<16x16xf32>
      %433 = arith.addf %428, %432 : vector<16x16xf32>
      %c93 = arith.constant 93 : index
      %434 = memref.load %arg3[%c93] : memref<98xf32, #tpu.memory_space<smem>>
      %c6_248 = arith.constant 6 : index
      %c0_249 = arith.constant 0 : index
      %435 = vector.load %arg8[%c6_248, %c0_249] : memref<22x128xf32, #tpu.memory_space<vmem>>, vector<16x16xf32>
      %436 = vector.broadcast %434 : f32 to vector<16x16xf32>
      %437 = arith.mulf %436, %435 : vector<16x16xf32>
      %438 = arith.addf %433, %437 : vector<16x16xf32>
      %c1_250 = arith.constant 1 : index
      %c0_251 = arith.constant 0 : index
      %c3_252 = arith.constant 3 : index
      %439 = vector.load %arg7[%c1_250, %c0_251, %c3_252] : memref<2x22x128xf32, #tpu.memory_space<vmem>>, vector<1x22x16xf32>
      %440 = vector.shape_cast %439 : vector<1x22x16xf32> to vector<22x16xf32>
      %c0_253 = arith.constant 0 : index
      %c0_254 = arith.constant 0 : index
      %441 = vector.load %arg8[%c0_253, %c0_254] : memref<22x128xf32, #tpu.memory_space<vmem>>, vector<22x16xf32>
      tpu.vector_store %arg8[%c0_253, %c0_254], %440 {strides = array<i32>} : memref<22x128xf32, #tpu.memory_space<vmem>>, vector<22x16xf32>,
      %c52 = arith.constant 52 : index
      %442 = memref.load %arg3[%c52] : memref<98xf32, #tpu.memory_space<smem>>
      %c0_255 = arith.constant 0 : index
      %c0_256 = arith.constant 0 : index
      %443 = vector.load %arg8[%c0_255, %c0_256] : memref<22x128xf32, #tpu.memory_space<vmem>>, vector<16x16xf32>
      %444 = vector.broadcast %442 : f32 to vector<16x16xf32>
      %445 = arith.mulf %444, %443 : vector<16x16xf32>
      %446 = arith.addf %438, %445 : vector<16x16xf32>
      %c59 = arith.constant 59 : index
      %447 = memref.load %arg3[%c59] : memref<98xf32, #tpu.memory_space<smem>>
      %c1_257 = arith.constant 1 : index
      %c0_258 = arith.constant 0 : index
      %448 = vector.load %arg8[%c1_257, %c0_258] : memref<22x128xf32, #tpu.memory_space<vmem>>, vector<16x16xf32>
      %449 = vector.broadcast %447 : f32 to vector<16x16xf32>
      %450 = arith.mulf %449, %448 : vector<16x16xf32>
      %451 = arith.addf %446, %450 : vector<16x16xf32>
      %c66 = arith.constant 66 : index
      %452 = memref.load %arg3[%c66] : memref<98xf32, #tpu.memory_space<smem>>
      %c2_259 = arith.constant 2 : index
      %c0_260 = arith.constant 0 : index
      %453 = vector.load %arg8[%c2_259, %c0_260] : memref<22x128xf32, #tpu.memory_space<vmem>>, vector<16x16xf32>
      %454 = vector.broadcast %452 : f32 to vector<16x16xf32>
      %455 = arith.mulf %454, %453 : vector<16x16xf32>
      %456 = arith.addf %451, %455 : vector<16x16xf32>
      %c73 = arith.constant 73 : index
      %457 = memref.load %arg3[%c73] : memref<98xf32, #tpu.memory_space<smem>>
      %c3_261 = arith.constant 3 : index
      %c0_262 = arith.constant 0 : index
      %458 = vector.load %arg8[%c3_261, %c0_262] : memref<22x128xf32, #tpu.memory_space<vmem>>, vector<16x16xf32>
      %459 = vector.broadcast %457 : f32 to vector<16x16xf32>
      %460 = arith.mulf %459, %458 : vector<16x16xf32>
      %461 = arith.addf %456, %460 : vector<16x16xf32>
      %c80 = arith.constant 80 : index
      %462 = memref.load %arg3[%c80] : memref<98xf32, #tpu.memory_space<smem>>
      %c4_263 = arith.constant 4 : index
      %c0_264 = arith.constant 0 : index
      %463 = vector.load %arg8[%c4_263, %c0_264] : memref<22x128xf32, #tpu.memory_space<vmem>>, vector<16x16xf32>
      %464 = vector.broadcast %462 : f32 to vector<16x16xf32>
      %465 = arith.mulf %464, %463 : vector<16x16xf32>
      %466 = arith.addf %461, %465 : vector<16x16xf32>
      %c87 = arith.constant 87 : index
      %467 = memref.load %arg3[%c87] : memref<98xf32, #tpu.memory_space<smem>>
      %c5_265 = arith.constant 5 : index
      %c0_266 = arith.constant 0 : index
      %468 = vector.load %arg8[%c5_265, %c0_266] : memref<22x128xf32, #tpu.memory_space<vmem>>, vector<16x16xf32>
      %469 = vector.broadcast %467 : f32 to vector<16x16xf32>
      %470 = arith.mulf %469, %468 : vector<16x16xf32>
      %471 = arith.addf %466, %470 : vector<16x16xf32>
      %c94 = arith.constant 94 : index
      %472 = memref.load %arg3[%c94] : memref<98xf32, #tpu.memory_space<smem>>
      %c6_267 = arith.constant 6 : index
      %c0_268 = arith.constant 0 : index
      %473 = vector.load %arg8[%c6_267, %c0_268] : memref<22x128xf32, #tpu.memory_space<vmem>>, vector<16x16xf32>
      %474 = vector.broadcast %472 : f32 to vector<16x16xf32>
      %475 = arith.mulf %474, %473 : vector<16x16xf32>
      %476 = arith.addf %471, %475 : vector<16x16xf32>
      %c1_269 = arith.constant 1 : index
      %c0_270 = arith.constant 0 : index
      %c4_271 = arith.constant 4 : index
      %477 = vector.load %arg7[%c1_269, %c0_270, %c4_271] : memref<2x22x128xf32, #tpu.memory_space<vmem>>, vector<1x22x16xf32>
      %478 = vector.shape_cast %477 : vector<1x22x16xf32> to vector<22x16xf32>
      %c0_272 = arith.constant 0 : index
      %c0_273 = arith.constant 0 : index
      %479 = vector.load %arg8[%c0_272, %c0_273] : memref<22x128xf32, #tpu.memory_space<vmem>>, vector<22x16xf32>
      tpu.vector_store %arg8[%c0_272, %c0_273], %478 {strides = array<i32>} : memref<22x128xf32, #tpu.memory_space<vmem>>, vector<22x16xf32>,
      %c53 = arith.constant 53 : index
      %480 = memref.load %arg3[%c53] : memref<98xf32, #tpu.memory_space<smem>>
      %c0_274 = arith.constant 0 : index
      %c0_275 = arith.constant 0 : index
      %481 = vector.load %arg8[%c0_274, %c0_275] : memref<22x128xf32, #tpu.memory_space<vmem>>, vector<16x16xf32>
      %482 = vector.broadcast %480 : f32 to vector<16x16xf32>
      %483 = arith.mulf %482, %481 : vector<16x16xf32>
      %484 = arith.addf %476, %483 : vector<16x16xf32>
      %c60 = arith.constant 60 : index
      %485 = memref.load %arg3[%c60] : memref<98xf32, #tpu.memory_space<smem>>
      %c1_276 = arith.constant 1 : index
      %c0_277 = arith.constant 0 : index
      %486 = vector.load %arg8[%c1_276, %c0_277] : memref<22x128xf32, #tpu.memory_space<vmem>>, vector<16x16xf32>
      %487 = vector.broadcast %485 : f32 to vector<16x16xf32>
      %488 = arith.mulf %487, %486 : vector<16x16xf32>
      %489 = arith.addf %484, %488 : vector<16x16xf32>
      %c67 = arith.constant 67 : index
      %490 = memref.load %arg3[%c67] : memref<98xf32, #tpu.memory_space<smem>>
      %c2_278 = arith.constant 2 : index
      %c0_279 = arith.constant 0 : index
      %491 = vector.load %arg8[%c2_278, %c0_279] : memref<22x128xf32, #tpu.memory_space<vmem>>, vector<16x16xf32>
      %492 = vector.broadcast %490 : f32 to vector<16x16xf32>
      %493 = arith.mulf %492, %491 : vector<16x16xf32>
      %494 = arith.addf %489, %493 : vector<16x16xf32>
      %c74 = arith.constant 74 : index
      %495 = memref.load %arg3[%c74] : memref<98xf32, #tpu.memory_space<smem>>
      %c3_280 = arith.constant 3 : index
      %c0_281 = arith.constant 0 : index
      %496 = vector.load %arg8[%c3_280, %c0_281] : memref<22x128xf32, #tpu.memory_space<vmem>>, vector<16x16xf32>
      %497 = vector.broadcast %495 : f32 to vector<16x16xf32>
      %498 = arith.mulf %497, %496 : vector<16x16xf32>
      %499 = arith.addf %494, %498 : vector<16x16xf32>
      %c81 = arith.constant 81 : index
      %500 = memref.load %arg3[%c81] : memref<98xf32, #tpu.memory_space<smem>>
      %c4_282 = arith.constant 4 : index
      %c0_283 = arith.constant 0 : index
      %501 = vector.load %arg8[%c4_282, %c0_283] : memref<22x128xf32, #tpu.memory_space<vmem>>, vector<16x16xf32>
      %502 = vector.broadcast %500 : f32 to vector<16x16xf32>
      %503 = arith.mulf %502, %501 : vector<16x16xf32>
      %504 = arith.addf %499, %503 : vector<16x16xf32>
      %c88 = arith.constant 88 : index
      %505 = memref.load %arg3[%c88] : memref<98xf32, #tpu.memory_space<smem>>
      %c5_284 = arith.constant 5 : index
      %c0_285 = arith.constant 0 : index
      %506 = vector.load %arg8[%c5_284, %c0_285] : memref<22x128xf32, #tpu.memory_space<vmem>>, vector<16x16xf32>
      %507 = vector.broadcast %505 : f32 to vector<16x16xf32>
      %508 = arith.mulf %507, %506 : vector<16x16xf32>
      %509 = arith.addf %504, %508 : vector<16x16xf32>
      %c95 = arith.constant 95 : index
      %510 = memref.load %arg3[%c95] : memref<98xf32, #tpu.memory_space<smem>>
      %c6_286 = arith.constant 6 : index
      %c0_287 = arith.constant 0 : index
      %511 = vector.load %arg8[%c6_286, %c0_287] : memref<22x128xf32, #tpu.memory_space<vmem>>, vector<16x16xf32>
      %512 = vector.broadcast %510 : f32 to vector<16x16xf32>
      %513 = arith.mulf %512, %511 : vector<16x16xf32>
      %514 = arith.addf %509, %513 : vector<16x16xf32>
      %c1_288 = arith.constant 1 : index
      %c0_289 = arith.constant 0 : index
      %c5_290 = arith.constant 5 : index
      %515 = vector.load %arg7[%c1_288, %c0_289, %c5_290] : memref<2x22x128xf32, #tpu.memory_space<vmem>>, vector<1x22x16xf32>
      %516 = vector.shape_cast %515 : vector<1x22x16xf32> to vector<22x16xf32>
      %c0_291 = arith.constant 0 : index
      %c0_292 = arith.constant 0 : index
      %517 = vector.load %arg8[%c0_291, %c0_292] : memref<22x128xf32, #tpu.memory_space<vmem>>, vector<22x16xf32>
      tpu.vector_store %arg8[%c0_291, %c0_292], %516 {strides = array<i32>} : memref<22x128xf32, #tpu.memory_space<vmem>>, vector<22x16xf32>,
      %c54 = arith.constant 54 : index
      %518 = memref.load %arg3[%c54] : memref<98xf32, #tpu.memory_space<smem>>
      %c0_293 = arith.constant 0 : index
      %c0_294 = arith.constant 0 : index
      %519 = vector.load %arg8[%c0_293, %c0_294] : memref<22x128xf32, #tpu.memory_space<vmem>>, vector<16x16xf32>
      %520 = vector.broadcast %518 : f32 to vector<16x16xf32>
      %521 = arith.mulf %520, %519 : vector<16x16xf32>
      %522 = arith.addf %514, %521 : vector<16x16xf32>
      %c61 = arith.constant 61 : index
      %523 = memref.load %arg3[%c61] : memref<98xf32, #tpu.memory_space<smem>>
      %c1_295 = arith.constant 1 : index
      %c0_296 = arith.constant 0 : index
      %524 = vector.load %arg8[%c1_295, %c0_296] : memref<22x128xf32, #tpu.memory_space<vmem>>, vector<16x16xf32>
      %525 = vector.broadcast %523 : f32 to vector<16x16xf32>
      %526 = arith.mulf %525, %524 : vector<16x16xf32>
      %527 = arith.addf %522, %526 : vector<16x16xf32>
      %c68 = arith.constant 68 : index
      %528 = memref.load %arg3[%c68] : memref<98xf32, #tpu.memory_space<smem>>
      %c2_297 = arith.constant 2 : index
      %c0_298 = arith.constant 0 : index
      %529 = vector.load %arg8[%c2_297, %c0_298] : memref<22x128xf32, #tpu.memory_space<vmem>>, vector<16x16xf32>
      %530 = vector.broadcast %528 : f32 to vector<16x16xf32>
      %531 = arith.mulf %530, %529 : vector<16x16xf32>
      %532 = arith.addf %527, %531 : vector<16x16xf32>
      %c75 = arith.constant 75 : index
      %533 = memref.load %arg3[%c75] : memref<98xf32, #tpu.memory_space<smem>>
      %c3_299 = arith.constant 3 : index
      %c0_300 = arith.constant 0 : index
      %534 = vector.load %arg8[%c3_299, %c0_300] : memref<22x128xf32, #tpu.memory_space<vmem>>, vector<16x16xf32>
      %535 = vector.broadcast %533 : f32 to vector<16x16xf32>
      %536 = arith.mulf %535, %534 : vector<16x16xf32>
      %537 = arith.addf %532, %536 : vector<16x16xf32>
      %c82 = arith.constant 82 : index
      %538 = memref.load %arg3[%c82] : memref<98xf32, #tpu.memory_space<smem>>
      %c4_301 = arith.constant 4 : index
      %c0_302 = arith.constant 0 : index
      %539 = vector.load %arg8[%c4_301, %c0_302] : memref<22x128xf32, #tpu.memory_space<vmem>>, vector<16x16xf32>
      %540 = vector.broadcast %538 : f32 to vector<16x16xf32>
      %541 = arith.mulf %540, %539 : vector<16x16xf32>
      %542 = arith.addf %537, %541 : vector<16x16xf32>
      %c89 = arith.constant 89 : index
      %543 = memref.load %arg3[%c89] : memref<98xf32, #tpu.memory_space<smem>>
      %c5_303 = arith.constant 5 : index
      %c0_304 = arith.constant 0 : index
      %544 = vector.load %arg8[%c5_303, %c0_304] : memref<22x128xf32, #tpu.memory_space<vmem>>, vector<16x16xf32>
      %545 = vector.broadcast %543 : f32 to vector<16x16xf32>
      %546 = arith.mulf %545, %544 : vector<16x16xf32>
      %547 = arith.addf %542, %546 : vector<16x16xf32>
      %c96 = arith.constant 96 : index
      %548 = memref.load %arg3[%c96] : memref<98xf32, #tpu.memory_space<smem>>
      %c6_305 = arith.constant 6 : index
      %c0_306 = arith.constant 0 : index
      %549 = vector.load %arg8[%c6_305, %c0_306] : memref<22x128xf32, #tpu.memory_space<vmem>>, vector<16x16xf32>
      %550 = vector.broadcast %548 : f32 to vector<16x16xf32>
      %551 = arith.mulf %550, %549 : vector<16x16xf32>
      %552 = arith.addf %547, %551 : vector<16x16xf32>
      %c1_307 = arith.constant 1 : index
      %c0_308 = arith.constant 0 : index
      %c6_309 = arith.constant 6 : index
      %553 = vector.load %arg7[%c1_307, %c0_308, %c6_309] : memref<2x22x128xf32, #tpu.memory_space<vmem>>, vector<1x22x16xf32>
      %554 = vector.shape_cast %553 : vector<1x22x16xf32> to vector<22x16xf32>
      %c0_310 = arith.constant 0 : index
      %c0_311 = arith.constant 0 : index
      %555 = vector.load %arg8[%c0_310, %c0_311] : memref<22x128xf32, #tpu.memory_space<vmem>>, vector<22x16xf32>
      tpu.vector_store %arg8[%c0_310, %c0_311], %554 {strides = array<i32>} : memref<22x128xf32, #tpu.memory_space<vmem>>, vector<22x16xf32>,
      %c55 = arith.constant 55 : index
      %556 = memref.load %arg3[%c55] : memref<98xf32, #tpu.memory_space<smem>>
      %c0_312 = arith.constant 0 : index
      %c0_313 = arith.constant 0 : index
      %557 = vector.load %arg8[%c0_312, %c0_313] : memref<22x128xf32, #tpu.memory_space<vmem>>, vector<16x16xf32>
      %558 = vector.broadcast %556 : f32 to vector<16x16xf32>
      %559 = arith.mulf %558, %557 : vector<16x16xf32>
      %560 = arith.addf %552, %559 : vector<16x16xf32>
      %c62 = arith.constant 62 : index
      %561 = memref.load %arg3[%c62] : memref<98xf32, #tpu.memory_space<smem>>
      %c1_314 = arith.constant 1 : index
      %c0_315 = arith.constant 0 : index
      %562 = vector.load %arg8[%c1_314, %c0_315] : memref<22x128xf32, #tpu.memory_space<vmem>>, vector<16x16xf32>
      %563 = vector.broadcast %561 : f32 to vector<16x16xf32>
      %564 = arith.mulf %563, %562 : vector<16x16xf32>
      %565 = arith.addf %560, %564 : vector<16x16xf32>
      %c69 = arith.constant 69 : index
      %566 = memref.load %arg3[%c69] : memref<98xf32, #tpu.memory_space<smem>>
      %c2_316 = arith.constant 2 : index
      %c0_317 = arith.constant 0 : index
      %567 = vector.load %arg8[%c2_316, %c0_317] : memref<22x128xf32, #tpu.memory_space<vmem>>, vector<16x16xf32>
      %568 = vector.broadcast %566 : f32 to vector<16x16xf32>
      %569 = arith.mulf %568, %567 : vector<16x16xf32>
      %570 = arith.addf %565, %569 : vector<16x16xf32>
      %c76 = arith.constant 76 : index
      %571 = memref.load %arg3[%c76] : memref<98xf32, #tpu.memory_space<smem>>
      %c3_318 = arith.constant 3 : index
      %c0_319 = arith.constant 0 : index
      %572 = vector.load %arg8[%c3_318, %c0_319] : memref<22x128xf32, #tpu.memory_space<vmem>>, vector<16x16xf32>
      %573 = vector.broadcast %571 : f32 to vector<16x16xf32>
      %574 = arith.mulf %573, %572 : vector<16x16xf32>
      %575 = arith.addf %570, %574 : vector<16x16xf32>
      %c83 = arith.constant 83 : index
      %576 = memref.load %arg3[%c83] : memref<98xf32, #tpu.memory_space<smem>>
      %c4_320 = arith.constant 4 : index
      %c0_321 = arith.constant 0 : index
      %577 = vector.load %arg8[%c4_320, %c0_321] : memref<22x128xf32, #tpu.memory_space<vmem>>, vector<16x16xf32>
      %578 = vector.broadcast %576 : f32 to vector<16x16xf32>
      %579 = arith.mulf %578, %577 : vector<16x16xf32>
      %580 = arith.addf %575, %579 : vector<16x16xf32>
      %c90 = arith.constant 90 : index
      %581 = memref.load %arg3[%c90] : memref<98xf32, #tpu.memory_space<smem>>
      %c5_322 = arith.constant 5 : index
      %c0_323 = arith.constant 0 : index
      %582 = vector.load %arg8[%c5_322, %c0_323] : memref<22x128xf32, #tpu.memory_space<vmem>>, vector<16x16xf32>
      %583 = vector.broadcast %581 : f32 to vector<16x16xf32>
      %584 = arith.mulf %583, %582 : vector<16x16xf32>
      %585 = arith.addf %580, %584 : vector<16x16xf32>
      %c97 = arith.constant 97 : index
      %586 = memref.load %arg3[%c97] : memref<98xf32, #tpu.memory_space<smem>>
      %c6_324 = arith.constant 6 : index
      %c0_325 = arith.constant 0 : index
      %587 = vector.load %arg8[%c6_324, %c0_325] : memref<22x128xf32, #tpu.memory_space<vmem>>, vector<16x16xf32>
      %588 = vector.broadcast %586 : f32 to vector<16x16xf32>
      %589 = arith.mulf %588, %587 : vector<16x16xf32>
      %590 = arith.addf %585, %589 : vector<16x16xf32>
      %591 = arith.negf %590 : vector<16x16xf32>
      %592 = math.exp %591 : vector<16x16xf32>
      %cst_326 = arith.constant 1.000000e+00 : f32
      %593 = vector.broadcast %cst_326 : f32 to vector<16x16xf32>
      %594 = arith.addf %593, %592 : vector<16x16xf32>
      %595 = arith.divf %593, %594 : vector<16x16xf32>
      %c0_327 = arith.constant 0 : index
      %c0_328 = arith.constant 0 : index
      %c0_329 = arith.constant 0 : index
      %c0_330 = arith.constant 0 : index
      %596 = vector.load %arg4[%c0_327, %c0_328, %c0_329, %c0_330] : memref<1x1x16x16xf32, #tpu.memory_space<vmem>>, vector<1x1x16x16xf32>
      %597 = vector.shape_cast %596 : vector<1x1x16x16xf32> to vector<16x16xf32>
      %598 = vector.shape_cast %595 : vector<16x16xf32> to vector<1x1x16x16xf32>
      tpu.vector_store %arg4[%c0_327, %c0_328, %c0_329, %c0_330], %598 {strides = array<i32>} : memref<1x1x16x16xf32, #tpu.memory_space<vmem>>, vector<1x1x16x16xf32>,
    } else {
    }
    return
  }
  func.func @transform_0(%arg0: i32, %arg1: i32) -> (i32, i32, i32, i32) {
    %c0_i32 = arith.constant 0 : i32
    %c0_i32_0 = arith.constant 0 : i32
    %c0_i32_1 = arith.constant 0 : i32
    return %arg0, %arg1, %c0_i32, %c0_i32_0 : i32, i32, i32, i32
  }
  func.func @transform_1(%arg0: i32, %arg1: i32) -> i32 {
    %c0_i32 = arith.constant 0 : i32
    %c0_i32_0 = arith.constant 0 : i32
    return %c0_i32 : i32
  }
  func.func @transform_2(%arg0: i32, %arg1: i32) -> (i32, i32, i32, i32) {
    %c0_i32 = arith.constant 0 : i32
    %c0_i32_0 = arith.constant 0 : i32
    %c0_i32_1 = arith.constant 0 : i32
    %c0_i32_2 = arith.constant 0 : i32
    return %arg0, %c0_i32, %c0_i32_0, %c0_i32_1 : i32, i32, i32, i32
  }
}

</mosaic_0001>

<llo_original>
// kernel: tpu_custom_call.1
$region0: #{tpu_custom_call.1}
  #allocation0 [shape = 'u32[]', space=smem, size = 0x4, offset = 0x4, fixed_abs, tag = 'smem constant byte address 0x4 - core index']
  #allocation1 [shape = 'u32[72,128]{1,0:T(1,128)}', space=vmem, size = 0x9000, scoped, tag = 'internal scratch']
  #allocation2 [shape = 'f32[16,16]{1,0:T(8,128)}', space=vmem, size = 0x2000, scoped, tag = 'scratch operand']
  #allocation3 [shape = 'f32[16,16]{1,0:T(8,128)}', space=vmem, size = 0x2000, scoped, tag = 'scratch operand']
  #allocation4 [shape = 'f32[2,22,128]{2,1,0:T(8,128)}', space=vmem, size = 0x6000, scoped, tag = 'scratch operand']
  #allocation5 [shape = 'f32[22,128]{1,0:T(8,128)}', space=vmem, size = 0x3000, scoped, tag = 'scratch operand']
  %s0 = inlined_call_operand.hbm [shape: f32[2,4,16,16], index: 0, kind: input, shape index: {}]
  %s1 = inlined_call_operand.hbm [shape: f32[98], index: 1, kind: input, shape index: {}]
  %s2 = inlined_call_operand.hbm [shape: f32[2,1,16,16], index: 2, kind: output, shape index: {}]
  %s3 = sld [smem:[#allocation0]]
  $region57: #{tpu_custom_call.1} parent=0
    _
  %s5 = ssub.s32 1, %s3
  %s6 = scalar_select 0, %s5, %s3
  $region1: #{tpu_custom_call.1} parent=0
    #allocation6 [shape = 'u8[32768]{0}', space=vmem, size = 0x8000, scoped, tag = 'input window, operand 0']
    #allocation7 [shape = 's32[2]{0}', space=sflag, size = 0x8, scoped, tag = 'scoped memory for tpu_custom_call.1']
    #allocation8 [shape = 's32[2]{0}', space=sflag, size = 0x8, scoped, tag = 'scoped memory for tpu_custom_call.1']
    #allocation9 [shape = 's32[2]{0}', space=sflag, size = 0x8, scoped, tag = 'scoped memory for tpu_custom_call.1']
    #allocation10 [shape = 'u8[512]{0}', space=smem, size = 0x200, scoped, tag = 'input window, operand 1, single buffered']
    #allocation11 [shape = 'u8[16384]{0}', space=vmem, size = 0x4000, scoped, tag = 'output window, operand 0']
    %7 = vsyncpa [#allocation7], 0
    %s8 = scalar_lea.sflag [#allocation7], 1
    %9 = vsyncpa %s8, 0
    %10 = vsyncpa [#allocation9], 0
    %11 = vsyncpa [#allocation8], 0
    %s12 = scalar_lea.sflag [#allocation8], 1
    %13 = vsyncpa %s12, 0
    loop: start=0, step=1, limit=6
    $region2: #{tpu_custom_call.1} parent=1 // loop_pre_header
      _
    $region3: #{tpu_custom_call.1} parent=1 // loop_header
      %s15 = sphi 0, %s19
      %p16 = scmp.ge.s32.totalorder %s15, 6
      %s22 = sphi 0, %s34
      %s23 = sphi 0, %s30
      %s24 = sphi 0, %s22
      %s25 = sphi 0, %s23
      %s26 = sphi 0, %s24
      %s27 = sphi 0, %s25
      %s39 = sphi 0, %s41
      %s42 = sphi 0, %s39
      %s43 = sphi 0, %s42
      %s59 = sphi 0, %s43
      %s63 = sphi 0, %s63
      %s65 = sphi 0, %s63
      %s66 = sphi 0, %s65
      %s80 = sphi 0, %s66
      %s86 = sphi 0, %s88
      %s89 = sphi 0, %s86
      %s90 = sphi 0, %s89
      %s106 = sphi 0, %s90
    $region4: #{tpu_custom_call.1} parent=1 // loop_header_branch
      %18 = sbr.rel (%p16) target = $region8
    $region5: #{tpu_custom_call.1} parent=1 // loop_body
      %s20 = ssub.s32 %s15, 1
      %s21 = ssub.s32 %s15, 2
      %s28 = sadd.s32 1, %s23
      %p29 = scmp.ge.s32.totalorder %s28, 2
      %s30 = scalar_select %p29, 0, %s28
      %s31 = sadd.s32 1, %s22
      %s32 = scalar_select %p29, %s31, %s22
      %p33 = scmp.ge.s32.totalorder %s32, 2
      %s34 = scalar_select %p33, 0, %s32
      %s35 = ssub.s32 %s22, %s34
      %s36 = ssub.s32 %s23, %s30
      %s37 = sor.u32 %s35, %s36
      %p38 = scmp.eq.s32.totalorder %s37, 0
      %s40 = sadd.s32 %s39, 1
      %s41 = scalar_select %p38, %s39, %s40
      %p44 = pneg %p38
      %p45 = scmp.eq.s32.totalorder %s15, 3
      %p46 = por %p44, %p45
      %p47 = scmp.ne.s32.totalorder %s39, %s42
      %p48 = scmp.eq.s32.totalorder %s15, 0
      %p49 = por %p47, %p48
      %p50 = scmp.ne.s32.totalorder %s39, %s42
      %p51 = scmp.eq.s32.totalorder %s20, 3
      %p52 = por %p50, %p51
      %p53 = scmp.ne.s32.totalorder %s42, %s43
      %p54 = scmp.eq.s32.totalorder %s20, 0
      %p55 = por %p53, %p54
      %p56 = scmp.ne.s32.totalorder %s42, %s43
      %p57 = scmp.eq.s32.totalorder %s21, 3
      %p58 = por %p56, %p57
      %p60 = scmp.ne.s32.totalorder %s43, %s59
      %p61 = scmp.eq.s32.totalorder %s21, 0
      %p62 = por %p60, %p61
      %s64 = sadd.s32 %s63, 1
      %p67 = scmp.eq.s32.totalorder %s15, 3
      %p68 = scmp.ne.s32.totalorder %s63, %s65
      %p69 = scmp.eq.s32.totalorder %s15, 0
      %p70 = por %p68, %p69
      %p71 = scmp.ne.s32.totalorder %s63, %s65
      %p72 = scmp.eq.s32.totalorder %s20, 3
      %p73 = por %p71, %p72
      %p74 = scmp.ne.s32.totalorder %s65, %s66
      %p75 = scmp.eq.s32.totalorder %s20, 0
      %p76 = por %p74, %p75
      %p77 = scmp.ne.s32.totalorder %s65, %s66
      %p78 = scmp.eq.s32.totalorder %s21, 3
      %p79 = por %p77, %p78
      %p81 = scmp.ne.s32.totalorder %s66, %s80
      %p82 = scmp.eq.s32.totalorder %s21, 0
      %p83 = por %p81, %p82
      %s84 = ssub.s32 %s22, %s34
      %p85 = scmp.eq.s32.totalorder %s84, 0
      %s87 = sadd.s32 %s86, 1
      %s88 = scalar_select %p85, %s86, %s87
      %p91 = pneg %p85
      %p92 = scmp.eq.s32.totalorder %s15, 3
      %p93 = por %p91, %p92
      %p94 = scmp.ne.s32.totalorder %s86, %s89
      %p95 = scmp.eq.s32.totalorder %s15, 0
      %p96 = por %p94, %p95
      %p97 = scmp.ne.s32.totalorder %s86, %s89
      %p98 = scmp.eq.s32.totalorder %s20, 3
      %p99 = por %p97, %p98
      %p100 = scmp.ne.s32.totalorder %s89, %s90
      %p101 = scmp.eq.s32.totalorder %s20, 0
      %p102 = por %p100, %p101
      %p103 = scmp.ne.s32.totalorder %s89, %s90
      %p104 = scmp.eq.s32.totalorder %s21, 3
      %p105 = por %p103, %p104
      %p107 = scmp.ne.s32.totalorder %s90, %s106
      %p108 = scmp.eq.s32.totalorder %s21, 0
      %p109 = por %p107, %p108
      %p110 = scmp.le.s32.totalorder 1, %s15
      %p111 = scmp.lt.s32.totalorder %s15, 5
      %p112 = pnand %p110, %p111
      %p113 = pneg %p112
      // Predicated region
      $region9: #{tpu_custom_call.1} parent=5 // pred_check
        _
      $region10: #{tpu_custom_call.1} parent=5 // pred_check_branch
        %115 = sbr.rel (%p112) target = $region12
      $region11: #{tpu_custom_call.1} parent=5 // pred_region
        %s116 = ssub.s32 %s15, 1
        // Predicated region
        $region13: #{tpu_custom_call.1} parent=11 // pred_check
          %p117 = pneg %p76
        $region14: #{tpu_custom_call.1} parent=11 // pred_check_branch
          %119 = sbr.rel (%p117) target = $region16
        $region15: #{tpu_custom_call.1} parent=11 // pred_region
          %121 = vsyncadd [#allocation9], 0
          %s123 = sshll.u32 %s1, 4
          %s124 = int_to_ptr.hbm [resolvable:$true] %s123
          %126 = dma.hbm_to_smem %s124, 16, [#allocation10], [#allocation9]
        $region16: #{tpu_custom_call.1} parent=11 // pred_fallthru
          _
      $region12: #{tpu_custom_call.1} parent=5 // pred_fallthru
        _
      %p127 = scmp.lt.s32.totalorder %s15, 4
      // Predicated region
      $region17: #{tpu_custom_call.1} parent=5 // pred_check
        %p128 = pneg %p127
      $region18: #{tpu_custom_call.1} parent=5 // pred_check_branch
        %130 = sbr.rel (%p128) target = $region20
      $region19: #{tpu_custom_call.1} parent=5 // pred_region
        // Predicated region
        $region21: #{tpu_custom_call.1} parent=19 // pred_check
          %p131 = pneg %p49
        $region22: #{tpu_custom_call.1} parent=19 // pred_check_branch
          %133 = sbr.rel (%p131) target = $region24
        $region23: #{tpu_custom_call.1} parent=19 // pred_region
          %s134 = sand.u32 %s39, 1
          %s135 = scalar_lea.sflag [#allocation7], %s134
          %s136 = sand.u32 %s39, 1
          %s137 = smul.addr %s136, 32
          %s138 = scalar_lea.vmem [#allocation6], %s137
          %s139 = smul.u32 2, %s23
          %141 = vsyncadd %s135, 0
          %s142 = smul.addr %s139, 2
          %s143 = smul.addr %s22, 8
          %s144 = sadd.s32 %s142, %s143
          %s145 = smul.addr %s144, 8
          %s146 = scalar_lea.hbm %s0, %s145
          %s147 = sshll.u32 %s146, 4
          %s148 = int_to_ptr.hbm [resolvable:$true] %s147
          %s149 = sshll.u32 %s138, 4
          %s150 = int_to_ptr.vmem [resolvable:$true] %s149
          %155 = dma.hbm_to_vmem [thread:$0]  %s148, 512, %s150, %s135, 128, 128, 8
        $region24: #{tpu_custom_call.1} parent=19 // pred_fallthru
          _
      $region20: #{tpu_custom_call.1} parent=5 // pred_fallthru
        _
      %p156 = scmp.le.s32.totalorder 1, %s15
      %p157 = scmp.lt.s32.totalorder %s15, 5
      %p158 = pnand %p156, %p157
      %p159 = pneg %p158
      // Predicated region
      $region25: #{tpu_custom_call.1} parent=5 // pred_check
        _
      $region26: #{tpu_custom_call.1} parent=5 // pred_check_branch
        %161 = sbr.rel (%p158) target = $region28
      $region27: #{tpu_custom_call.1} parent=5 // pred_region
        %s162 = ssub.s32 %s15, 1
        %s163 = sand.u32 %s42, 1
        %s164 = scalar_lea.sflag [#allocation7], %s163
        %s165 = sand.u32 %s42, 1
        %s166 = smul.addr %s165, 32
        %s167 = scalar_lea.vmem [#allocation6], %s166
        // Predicated region
        $region29: #{tpu_custom_call.1} parent=27 // pred_check
          %p168 = pneg %p55
        $region30: #{tpu_custom_call.1} parent=27 // pred_check_branch
          %170 = sbr.rel (%p168) target = $region32
        $region31: #{tpu_custom_call.1} parent=27 // pred_region
          %172 = dma.done %s164, 512
        $region32: #{tpu_custom_call.1} parent=27 // pred_fallthru
          _
        // Predicated region
        $region33: #{tpu_custom_call.1} parent=27 // pred_check
          %p173 = pneg %p76
        $region34: #{tpu_custom_call.1} parent=27 // pred_check_branch
          %175 = sbr.rel (%p173) target = $region36
        $region35: #{tpu_custom_call.1} parent=27 // pred_region
          %177 = dma.done [#allocation9], 16
        $region36: #{tpu_custom_call.1} parent=27 // pred_fallthru
          _
        %178 = sfence
        %s179 = sand.u32 %s42, 1
        %s180 = scalar_lea.sflag [#allocation7], %s179
        %s181 = sand.u32 %s42, 1
        %s182 = smul.addr %s181, 32
        %s183 = scalar_lea.vmem [#allocation6], %s182
        %p184 = pneg %p55
        %p185 = pneg %p52
        %p186 = pneg %p76
        %p187 = pneg %p73
        %p188 = pneg %p102
        %p189 = pneg %p99
        %s190 = sand.u32 %s89, 1
        %s191 = scalar_lea.sflag [#allocation8], %s190
        %s192 = sand.u32 %s89, 1
        %s193 = smul.addr %s192, 16
        %s194 = scalar_lea.vmem [#allocation11], %s193
        %s195 = smul.u32 2, %s25
        %p196 = scmp.eq.s32.totalorder %s25, 0
        // Predicated region
        $region37: #{tpu_custom_call.1} parent=27 // pred_check
          %p197 = pneg %p196
        $region38: #{tpu_custom_call.1} parent=27 // pred_check_branch
          %199 = sbr.rel (%p197) target = $region40
        $region39: #{tpu_custom_call.1} parent=27 // pred_region
          %vm200 = vcmask 130048
          %201 = vst.msk [vmem:[#allocation2] sm:$0xff] %vm200, 0.0
          %202 = vst.msk [vmem:[#allocation2 + $0x8] sm:$0xff] %vm200, 0.0
          %203 = vst.msk [vmem:[#allocation3] sm:$0xff] %vm200, -inf
          %204 = vst.msk [vmem:[#allocation3 + $0x8] sm:$0xff] %vm200, -inf
        $region40: #{tpu_custom_call.1} parent=27 // pred_fallthru
          _
        %v205 = vld [vmem:[#allocation2] sm:$0xff]
        %v206 = vld [vmem:[#allocation2 + $0x8] sm:$0xff]
        %v207 = vld [vmem:[#allocation3] sm:$0xff]
        %v208 = vld [vmem:[#allocation3 + $0x8] sm:$0xff]
        %v209 = vld [vmem:[%s167] sm:$0xff]
        %v210 = vld [vmem:[%s167 + $0x8] sm:$0xff]
        %v211 = vadd.f32 %v205, %v209
        %v212 = vadd.f32 %v206, %v210
        %v213 = vmax.f32 %v207, %v209
        %v214 = vmax.f32 %v208, %v210
        %s215 = scalar_lea.vmem %s167, 16 [#allocation6]
        %v216 = vld [vmem:[%s215] sm:$0xff]
        %v217 = vld [vmem:[%s215 + $0x8] sm:$0xff]
        %v218 = vadd.f32 %v211, %v216
        %v219 = vadd.f32 %v212, %v217
        %v220 = vmax.f32 %v213, %v216
        %v221 = vmax.f32 %v214, %v217
        %vm222 = vcmask 130048
        %223 = vst.msk [vmem:[#allocation2] sm:$0xff] %vm222, %v218
        %224 = vst.msk [vmem:[#allocation2 + $0x8] sm:$0xff] %vm222, %v219
        %225 = vst.msk [vmem:[#allocation3] sm:$0xff] %vm222, %v220
        %226 = vst.msk [vmem:[#allocation3 + $0x8] sm:$0xff] %vm222, %v221
        %p227 = scmp.eq.s32.totalorder %s25, 1
        // Predicated region
        $region41: #{tpu_custom_call.1} parent=27 // pred_check
          %p228 = pneg %p227
        $region42: #{tpu_custom_call.1} parent=27 // pred_check_branch
          %230 = sbr.rel (%p228) target = $region44
        $region43: #{tpu_custom_call.1} parent=27 // pred_region
          %231 = vst [vmem:[#allocation4] sm:$0x7] 0.0
          %232 = vst [vmem:[#allocation4 + $0x13] sm:$0x7] 0.0
          %vm233 = vcmask 23552
          %234 = vst.msk [vmem:[#allocation4 + $0x3] sm:$0xff] %vm233, 0.0
          %235 = vst.msk [vmem:[#allocation4 + $0xb] sm:$0xff] %vm233, 0.0
          %vm236 = vcmask 1047704
          %237 = vst.msk [vmem:[#allocation4 + $0x3] sm:$0xff] %vm236, 0.0
          %238 = vst.msk [vmem:[#allocation4 + $0xb] sm:$0xff] %vm236, 0.0
          %s239 = scalar_lea.vmem [#allocation4], 24
          %240 = vst [vmem:[%s239] sm:$0x7] 0.0
          %241 = vst [vmem:[%s239 + $0x13] sm:$0x7] 0.0
          %242 = vst.msk [vmem:[%s239 + $0x3] sm:$0xff] %vm233, 0.0
          %243 = vst.msk [vmem:[%s239 + $0xb] sm:$0xff] %vm233, 0.0
          %244 = vst.msk [vmem:[%s239 + $0x3] sm:$0xff] %vm236, 0.0
          %245 = vst.msk [vmem:[%s239 + $0xb] sm:$0xff] %vm236, 0.0
          %v246 = vld [vmem:[#allocation2] sm:$0xff]
          %v247 = vld [vmem:[#allocation2 + $0x8] sm:$0xff]
          %250 = vrot.lane.b32.xlu0 %v246, 3
          %v251 = vpop.permute.xlu0 %250
          %252 = vrot.lane.b32.xlu0 %v247, 3
          %v253 = vpop.permute.xlu0 %252
          %vm256 = vcmask 154648
          %257 = vst.msk [vmem:[#allocation4 + $0x3] sm:$0xff] %vm256, %v251
          %258 = vst.msk [vmem:[#allocation4 + $0xb] sm:$0xff] %vm256, %v253
          %v259 = vld [vmem:[#allocation3] sm:$0xff]
          %v260 = vld [vmem:[#allocation3 + $0x8] sm:$0xff]
          %263 = vrot.lane.b32.xlu0 %v259, 3
          %v264 = vpop.permute.xlu0 %263
          %265 = vrot.lane.b32.xlu0 %v260, 3
          %v266 = vpop.permute.xlu0 %265
          %269 = vst.msk [vmem:[%s239 + $0x3] sm:$0xff] %vm256, %v264
          %270 = vst.msk [vmem:[%s239 + $0xb] sm:$0xff] %vm256, %v266
          %v271 = vld [vmem:[#allocation4] sm:$0xff]
          %v272 = vld [vmem:[#allocation4 + $0x8] sm:$0xff]
          %v273 = vld [vmem:[#allocation4 + $0x10] sm:$0x3f]
          %274 = vst.msk [vmem:[#allocation5] sm:$0xff] %vm222, %v271
          %275 = vst.msk [vmem:[#allocation5 + $0x8] sm:$0xff] %vm222, %v272
          %vm276 = vcmask 128000
          %277 = vst.msk [vmem:[#allocation5 + $0x10] sm:$0x3f] %vm276, %v273
          %s278 = sld [smem:[#allocation10]]
          %v279 = vld [vmem:[#allocation5] sm:$0xff]
          %v280 = vld [vmem:[#allocation5 + $0x8] sm:$0xff]
          %v281 = vstv %s278
          %v282 = vmul.f32 %v281, %v279
          %v283 = vmul.f32 %v281, %v280
          %v284 = vadd.f32 %v282, 0.0
          %v285 = vadd.f32 %v283, 0.0
          %s286 = sld [smem:[#allocation10 + $0x7]]
          %v287 = vld [vmem:[#allocation5 + $0x1] sm:$0xff]
          %v288 = vld [vmem:[#allocation5 + $0x9] sm:$0xff]
          %v289 = vstv %s286
          %v290 = vmul.f32 %v289, %v287
          %v291 = vmul.f32 %v289, %v288
          %v292 = vadd.f32 %v284, %v290
          %v293 = vadd.f32 %v285, %v291
          %s294 = sld [smem:[#allocation10 + $0xe]]
          %v295 = vld [vmem:[#allocation5 + $0x2] sm:$0xff]
          %v296 = vld [vmem:[#allocation5 + $0xa] sm:$0xff]
          %v297 = vstv %s294
          %v298 = vmul.f32 %v297, %v295
          %v299 = vmul.f32 %v297, %v296
          %v300 = vadd.f32 %v292, %v298
          %v301 = vadd.f32 %v293, %v299
          %s302 = sld [smem:[#allocation10 + $0x15]]
          %v303 = vld [vmem:[#allocation5 + $0x3] sm:$0xff]
          %v304 = vld [vmem:[#allocation5 + $0xb] sm:$0xff]
          %v305 = vstv %s302
          %v306 = vmul.f32 %v305, %v303
          %v307 = vmul.f32 %v305, %v304
          %v308 = vadd.f32 %v300, %v306
          %v309 = vadd.f32 %v301, %v307
          %s310 = sld [smem:[#allocation10 + $0x1c]]
          %v311 = vld [vmem:[#allocation5 + $0x4] sm:$0xff]
          %v312 = vld [vmem:[#allocation5 + $0xc] sm:$0xff]
          %v313 = vstv %s310
          %v314 = vmul.f32 %v313, %v311
          %v315 = vmul.f32 %v313, %v312
          %v316 = vadd.f32 %v308, %v314
          %v317 = vadd.f32 %v309, %v315
          %s318 = sld [smem:[#allocation10 + $0x23]]
          %v319 = vld [vmem:[#allocation5 + $0x5] sm:$0xff]
          %v320 = vld [vmem:[#allocation5 + $0xd] sm:$0xff]
          %v321 = vstv %s318
          %v322 = vmul.f32 %v321, %v319
          %v323 = vmul.f32 %v321, %v320
          %v324 = vadd.f32 %v316, %v322
          %v325 = vadd.f32 %v317, %v323
          %s326 = sld [smem:[#allocation10 + $0x2a]]
          %v327 = vld [vmem:[#allocation5 + $0x6] sm:$0xff]
          %v328 = vld [vmem:[#allocation5 + $0xe] sm:$0xff]
          %v329 = vstv %s326
          %v330 = vmul.f32 %v329, %v327
          %v331 = vmul.f32 %v329, %v328
          %v332 = vadd.f32 %v324, %v330
          %v333 = vadd.f32 %v325, %v331
          %v334 = vld [vmem:[#allocation4] sm:$0xff]
          %v335 = vld [vmem:[#allocation4 + $0x8] sm:$0xff]
          %v336 = vld [vmem:[#allocation4 + $0x10] sm:$0x3f]
          %340 = vrot.lane.b32.xlu0 %v334, 127
          %v341 = vpop.permute.xlu0 %340
          %342 = vrot.lane.b32.xlu0 %v335, 127
          %v343 = vpop.permute.xlu0 %342
          %344 = vrot.lane.b32.xlu0 %v336, 127
          %v345 = vpop.permute.xlu0 %344
          %349 = vst.msk [vmem:[#allocation5] sm:$0xff] %vm222, %v341
          %350 = vst.msk [vmem:[#allocation5 + $0x8] sm:$0xff] %vm222, %v343
          %351 = vst.msk [vmem:[#allocation5 + $0x10] sm:$0x3f] %vm276, %v345
          %s352 = sld [smem:[#allocation10 + $0x1]]
          %v353 = vld [vmem:[#allocation5] sm:$0xff]
          %v354 = vld [vmem:[#allocation5 + $0x8] sm:$0xff]
          %v355 = vstv %s352
          %v356 = vmul.f32 %v355, %v353
          %v357 = vmul.f32 %v355, %v354
          %v358 = vadd.f32 %v332, %v356
          %v359 = vadd.f32 %v333, %v357
          %s360 = sld [smem:[#allocation10 + $0x8]]
          %v361 = vld [vmem:[#allocation5 + $0x1] sm:$0xff]
          %v362 = vld [vmem:[#allocation5 + $0x9] sm:$0xff]
          %v363 = vstv %s360
          %v364 = vmul.f32 %v363, %v361
          %v365 = vmul.f32 %v363, %v362
          %v366 = vadd.f32 %v358, %v364
          %v367 = vadd.f32 %v359, %v365
          %s368 = sld [smem:[#allocation10 + $0xf]]
          %v369 = vld [vmem:[#allocation5 + $0x2] sm:$0xff]
          %v370 = vld [vmem:[#allocation5 + $0xa] sm:$0xff]
          %v371 = vstv %s368
          %v372 = vmul.f32 %v371, %v369
          %v373 = vmul.f32 %v371, %v370
          %v374 = vadd.f32 %v366, %v372
          %v375 = vadd.f32 %v367, %v373
          %s376 = sld [smem:[#allocation10 + $0x16]]
          %v377 = vld [vmem:[#allocation5 + $0x3] sm:$0xff]
          %v378 = vld [vmem:[#allocation5 + $0xb] sm:$0xff]
          %v379 = vstv %s376
          %v380 = vmul.f32 %v379, %v377
          %v381 = vmul.f32 %v379, %v378
          %v382 = vadd.f32 %v374, %v380
          %v383 = vadd.f32 %v375, %v381
          %s384 = sld [smem:[#allocation10 + $0x1d]]
          %v385 = vld [vmem:[#allocation5 + $0x4] sm:$0xff]
          %v386 = vld [vmem:[#allocation5 + $0xc] sm:$0xff]
          %v387 = vstv %s384
          %v388 = vmul.f32 %v387, %v385
          %v389 = vmul.f32 %v387, %v386
          %v390 = vadd.f32 %v382, %v388
          %v391 = vadd.f32 %v383, %v389
          %s392 = sld [smem:[#allocation10 + $0x24]]
          %v393 = vld [vmem:[#allocation5 + $0x5] sm:$0xff]
          %v394 = vld [vmem:[#allocation5 + $0xd] sm:$0xff]
          %v395 = vstv %s392
          %v396 = vmul.f32 %v395, %v393
          %v397 = vmul.f32 %v395, %v394
          %v398 = vadd.f32 %v390, %v396
          %v399 = vadd.f32 %v391, %v397
          %s400 = sld [smem:[#allocation10 + $0x2b]]
          %v401 = vld [vmem:[#allocation5 + $0x6] sm:$0xff]
          %v402 = vld [vmem:[#allocation5 + $0xe] sm:$0xff]
          %v403 = vstv %s400
          %v404 = vmul.f32 %v403, %v401
          %v405 = vmul.f32 %v403, %v402
          %v406 = vadd.f32 %v398, %v404
          %v407 = vadd.f32 %v399, %v405
          %v408 = vld [vmem:[#allocation4] sm:$0xff]
          %v409 = vld [vmem:[#allocation4 + $0x8] sm:$0xff]
          %v410 = vld [vmem:[#allocation4 + $0x10] sm:$0x3f]
          %414 = vrot.lane.b32.xlu0 %v408, 126
          %v415 = vpop.permute.xlu0 %414
          %416 = vrot.lane.b32.xlu0 %v409, 126
          %v417 = vpop.permute.xlu0 %416
          %418 = vrot.lane.b32.xlu0 %v410, 126
          %v419 = vpop.permute.xlu0 %418
          %423 = vst.msk [vmem:[#allocation5] sm:$0xff] %vm222, %v415
          %424 = vst.msk [vmem:[#allocation5 + $0x8] sm:$0xff] %vm222, %v417
          %425 = vst.msk [vmem:[#allocation5 + $0x10] sm:$0x3f] %vm276, %v419
          %s426 = sld [smem:[#allocation10 + $0x2]]
          %v427 = vld [vmem:[#allocation5] sm:$0xff]
          %v428 = vld [vmem:[#allocation5 + $0x8] sm:$0xff]
          %v429 = vstv %s426
          %v430 = vmul.f32 %v429, %v427
          %v431 = vmul.f32 %v429, %v428
          %v432 = vadd.f32 %v406, %v430
          %v433 = vadd.f32 %v407, %v431
          %s434 = sld [smem:[#allocation10 + $0x9]]
          %v435 = vld [vmem:[#allocation5 + $0x1] sm:$0xff]
          %v436 = vld [vmem:[#allocation5 + $0x9] sm:$0xff]
          %v437 = vstv %s434
          %v438 = vmul.f32 %v437, %v435
          %v439 = vmul.f32 %v437, %v436
          %v440 = vadd.f32 %v432, %v438
          %v441 = vadd.f32 %v433, %v439
          %s442 = sld [smem:[#allocation10 + $0x10]]
          %v443 = vld [vmem:[#allocation5 + $0x2] sm:$0xff]
          %v444 = vld [vmem:[#allocation5 + $0xa] sm:$0xff]
          %v445 = vstv %s442
          %v446 = vmul.f32 %v445, %v443
          %v447 = vmul.f32 %v445, %v444
          %v448 = vadd.f32 %v440, %v446
          %v449 = vadd.f32 %v441, %v447
          %s450 = sld [smem:[#allocation10 + $0x17]]
          %v451 = vld [vmem:[#allocation5 + $0x3] sm:$0xff]
          %v452 = vld [vmem:[#allocation5 + $0xb] sm:$0xff]
          %v453 = vstv %s450
          %v454 = vmul.f32 %v453, %v451
          %v455 = vmul.f32 %v453, %v452
          %v456 = vadd.f32 %v448, %v454
          %v457 = vadd.f32 %v449, %v455
          %s458 = sld [smem:[#allocation10 + $0x1e]]
          %v459 = vld [vmem:[#allocation5 + $0x4] sm:$0xff]
          %v460 = vld [vmem:[#allocation5 + $0xc] sm:$0xff]
          %v461 = vstv %s458
          %v462 = vmul.f32 %v461, %v459
          %v463 = vmul.f32 %v461, %v460
          %v464 = vadd.f32 %v456, %v462
          %v465 = vadd.f32 %v457, %v463
          %s466 = sld [smem:[#allocation10 + $0x25]]
          %v467 = vld [vmem:[#allocation5 + $0x5] sm:$0xff]
          %v468 = vld [vmem:[#allocation5 + $0xd] sm:$0xff]
          %v469 = vstv %s466
          %v470 = vmul.f32 %v469, %v467
          %v471 = vmul.f32 %v469, %v468
          %v472 = vadd.f32 %v464, %v470
          %v473 = vadd.f32 %v465, %v471
          %s474 = sld [smem:[#allocation10 + $0x2c]]
          %v475 = vld [vmem:[#allocation5 + $0x6] sm:$0xff]
          %v476 = vld [vmem:[#allocation5 + $0xe] sm:$0xff]
          %v477 = vstv %s474
          %v478 = vmul.f32 %v477, %v475
          %v479 = vmul.f32 %v477, %v476
          %v480 = vadd.f32 %v472, %v478
          %v481 = vadd.f32 %v473, %v479
          %v482 = vld [vmem:[#allocation4] sm:$0xff]
          %v483 = vld [vmem:[#allocation4 + $0x8] sm:$0xff]
          %v484 = vld [vmem:[#allocation4 + $0x10] sm:$0x3f]
          %488 = vrot.lane.b32.xlu0 %v482, 125
          %v489 = vpop.permute.xlu0 %488
          %490 = vrot.lane.b32.xlu0 %v483, 125
          %v491 = vpop.permute.xlu0 %490
          %492 = vrot.lane.b32.xlu0 %v484, 125
          %v493 = vpop.permute.xlu0 %492
          %497 = vst.msk [vmem:[#allocation5] sm:$0xff] %vm222, %v489
          %498 = vst.msk [vmem:[#allocation5 + $0x8] sm:$0xff] %vm222, %v491
          %499 = vst.msk [vmem:[#allocation5 + $0x10] sm:$0x3f] %vm276, %v493
          %s500 = sld [smem:[#allocation10 + $0x3]]
          %v501 = vld [vmem:[#allocation5] sm:$0xff]
          %v502 = vld [vmem:[#allocation5 + $0x8] sm:$0xff]
          %v503 = vstv %s500
          %v504 = vmul.f32 %v503, %v501
          %v505 = vmul.f32 %v503, %v502
          %v506 = vadd.f32 %v480, %v504
          %v507 = vadd.f32 %v481, %v505
          %s508 = sld [smem:[#allocation10 + $0xa]]
          %v509 = vld [vmem:[#allocation5 + $0x1] sm:$0xff]
          %v510 = vld [vmem:[#allocation5 + $0x9] sm:$0xff]
          %v511 = vstv %s508
          %v512 = vmul.f32 %v511, %v509
          %v513 = vmul.f32 %v511, %v510
          %v514 = vadd.f32 %v506, %v512
          %v515 = vadd.f32 %v507, %v513
          %s516 = sld [smem:[#allocation10 + $0x11]]
          %v517 = vld [vmem:[#allocation5 + $0x2] sm:$0xff]
          %v518 = vld [vmem:[#allocation5 + $0xa] sm:$0xff]
          %v519 = vstv %s516
          %v520 = vmul.f32 %v519, %v517
          %v521 = vmul.f32 %v519, %v518
          %v522 = vadd.f32 %v514, %v520
          %v523 = vadd.f32 %v515, %v521
          %s524 = sld [smem:[#allocation10 + $0x18]]
          %v525 = vld [vmem:[#allocation5 + $0x3] sm:$0xff]
          %v526 = vld [vmem:[#allocation5 + $0xb] sm:$0xff]
          %v527 = vstv %s524
          %v528 = vmul.f32 %v527, %v525
          %v529 = vmul.f32 %v527, %v526
          %v530 = vadd.f32 %v522, %v528
          %v531 = vadd.f32 %v523, %v529
          %s532 = sld [smem:[#allocation10 + $0x1f]]
          %v533 = vld [vmem:[#allocation5 + $0x4] sm:$0xff]
          %v534 = vld [vmem:[#allocation5 + $0xc] sm:$0xff]
          %v535 = vstv %s532
          %v536 = vmul.f32 %v535, %v533
          %v537 = vmul.f32 %v535, %v534
          %v538 = vadd.f32 %v530, %v536
          %v539 = vadd.f32 %v531, %v537
          %s540 = sld [smem:[#allocation10 + $0x26]]
          %v541 = vld [vmem:[#allocation5 + $0x5] sm:$0xff]
          %v542 = vld [vmem:[#allocation5 + $0xd] sm:$0xff]
          %v543 = vstv %s540
          %v544 = vmul.f32 %v543, %v541
          %v545 = vmul.f32 %v543, %v542
          %v546 = vadd.f32 %v538, %v544
          %v547 = vadd.f32 %v539, %v545
          %s548 = sld [smem:[#allocation10 + $0x2d]]
          %v549 = vld [vmem:[#allocation5 + $0x6] sm:$0xff]
          %v550 = vld [vmem:[#allocation5 + $0xe] sm:$0xff]
          %v551 = vstv %s548
          %v552 = vmul.f32 %v551, %v549
          %v553 = vmul.f32 %v551, %v550
          %v554 = vadd.f32 %v546, %v552
          %v555 = vadd.f32 %v547, %v553
          %v556 = vld [vmem:[#allocation4] sm:$0xff]
          %v557 = vld [vmem:[#allocation4 + $0x8] sm:$0xff]
          %v558 = vld [vmem:[#allocation4 + $0x10] sm:$0x3f]
          %562 = vrot.lane.b32.xlu0 %v556, 124
          %v563 = vpop.permute.xlu0 %562
          %564 = vrot.lane.b32.xlu0 %v557, 124
          %v565 = vpop.permute.xlu0 %564
          %566 = vrot.lane.b32.xlu0 %v558, 124
          %v567 = vpop.permute.xlu0 %566
          %571 = vst.msk [vmem:[#allocation5] sm:$0xff] %vm222, %v563
          %572 = vst.msk [vmem:[#allocation5 + $0x8] sm:$0xff] %vm222, %v565
          %573 = vst.msk [vmem:[#allocation5 + $0x10] sm:$0x3f] %vm276, %v567
          %s574 = sld [smem:[#allocation10 + $0x4]]
          %v575 = vld [vmem:[#allocation5] sm:$0xff]
          %v576 = vld [vmem:[#allocation5 + $0x8] sm:$0xff]
          %v577 = vstv %s574
          %v578 = vmul.f32 %v577, %v575
          %v579 = vmul.f32 %v577, %v576
          %v580 = vadd.f32 %v554, %v578
          %v581 = vadd.f32 %v555, %v579
          %s582 = sld [smem:[#allocation10 + $0xb]]
          %v583 = vld [vmem:[#allocation5 + $0x1] sm:$0xff]
          %v584 = vld [vmem:[#allocation5 + $0x9] sm:$0xff]
          %v585 = vstv %s582
          %v586 = vmul.f32 %v585, %v583
          %v587 = vmul.f32 %v585, %v584
          %v588 = vadd.f32 %v580, %v586
          %v589 = vadd.f32 %v581, %v587
          %s590 = sld [smem:[#allocation10 + $0x12]]
          %v591 = vld [vmem:[#allocation5 + $0x2] sm:$0xff]
          %v592 = vld [vmem:[#allocation5 + $0xa] sm:$0xff]
          %v593 = vstv %s590
          %v594 = vmul.f32 %v593, %v591
          %v595 = vmul.f32 %v593, %v592
          %v596 = vadd.f32 %v588, %v594
          %v597 = vadd.f32 %v589, %v595
          %s598 = sld [smem:[#allocation10 + $0x19]]
          %v599 = vld [vmem:[#allocation5 + $0x3] sm:$0xff]
          %v600 = vld [vmem:[#allocation5 + $0xb] sm:$0xff]
          %v601 = vstv %s598
          %v602 = vmul.f32 %v601, %v599
          %v603 = vmul.f32 %v601, %v600
          %v604 = vadd.f32 %v596, %v602
          %v605 = vadd.f32 %v597, %v603
          %s606 = sld [smem:[#allocation10 + $0x20]]
          %v607 = vld [vmem:[#allocation5 + $0x4] sm:$0xff]
          %v608 = vld [vmem:[#allocation5 + $0xc] sm:$0xff]
          %v609 = vstv %s606
          %v610 = vmul.f32 %v609, %v607
          %v611 = vmul.f32 %v609, %v608
          %v612 = vadd.f32 %v604, %v610
          %v613 = vadd.f32 %v605, %v611
          %s614 = sld [smem:[#allocation10 + $0x27]]
          %v615 = vld [vmem:[#allocation5 + $0x5] sm:$0xff]
          %v616 = vld [vmem:[#allocation5 + $0xd] sm:$0xff]
          %v617 = vstv %s614
          %v618 = vmul.f32 %v617, %v615
          %v619 = vmul.f32 %v617, %v616
          %v620 = vadd.f32 %v612, %v618
          %v621 = vadd.f32 %v613, %v619
          %s622 = sld [smem:[#allocation10 + $0x2e]]
          %v623 = vld [vmem:[#allocation5 + $0x6] sm:$0xff]
          %v624 = vld [vmem:[#allocation5 + $0xe] sm:$0xff]
          %v625 = vstv %s622
          %v626 = vmul.f32 %v625, %v623
          %v627 = vmul.f32 %v625, %v624
          %v628 = vadd.f32 %v620, %v626
          %v629 = vadd.f32 %v621, %v627
          %v630 = vld [vmem:[#allocation4] sm:$0xff]
          %v631 = vld [vmem:[#allocation4 + $0x8] sm:$0xff]
          %v632 = vld [vmem:[#allocation4 + $0x10] sm:$0x3f]
          %636 = vrot.lane.b32.xlu0 %v630, 123
          %v637 = vpop.permute.xlu0 %636
          %638 = vrot.lane.b32.xlu0 %v631, 123
          %v639 = vpop.permute.xlu0 %638
          %640 = vrot.lane.b32.xlu0 %v632, 123
          %v641 = vpop.permute.xlu0 %640
          %645 = vst.msk [vmem:[#allocation5] sm:$0xff] %vm222, %v637
          %646 = vst.msk [vmem:[#allocation5 + $0x8] sm:$0xff] %vm222, %v639
          %647 = vst.msk [vmem:[#allocation5 + $0x10] sm:$0x3f] %vm276, %v641
          %s648 = sld [smem:[#allocation10 + $0x5]]
          %v649 = vld [vmem:[#allocation5] sm:$0xff]
          %v650 = vld [vmem:[#allocation5 + $0x8] sm:$0xff]
          %v651 = vstv %s648
          %v652 = vmul.f32 %v651, %v649
          %v653 = vmul.f32 %v651, %v650
          %v654 = vadd.f32 %v628, %v652
          %v655 = vadd.f32 %v629, %v653
          %s656 = sld [smem:[#allocation10 + $0xc]]
          %v657 = vld [vmem:[#allocation5 + $0x1] sm:$0xff]
          %v658 = vld [vmem:[#allocation5 + $0x9] sm:$0xff]
          %v659 = vstv %s656
          %v660 = vmul.f32 %v659, %v657
          %v661 = vmul.f32 %v659, %v658
          %v662 = vadd.f32 %v654, %v660
          %v663 = vadd.f32 %v655, %v661
          %s664 = sld [smem:[#allocation10 + $0x13]]
          %v665 = vld [vmem:[#allocation5 + $0x2] sm:$0xff]
          %v666 = vld [vmem:[#allocation5 + $0xa] sm:$0xff]
          %v667 = vstv %s664
          %v668 = vmul.f32 %v667, %v665
          %v669 = vmul.f32 %v667, %v666
          %v670 = vadd.f32 %v662, %v668
          %v671 = vadd.f32 %v663, %v669
          %s672 = sld [smem:[#allocation10 + $0x1a]]
          %v673 = vld [vmem:[#allocation5 + $0x3] sm:$0xff]
          %v674 = vld [vmem:[#allocation5 + $0xb] sm:$0xff]
          %v675 = vstv %s672
          %v676 = vmul.f32 %v675, %v673
          %v677 = vmul.f32 %v675, %v674
          %v678 = vadd.f32 %v670, %v676
          %v679 = vadd.f32 %v671, %v677
          %s680 = sld [smem:[#allocation10 + $0x21]]
          %v681 = vld [vmem:[#allocation5 + $0x4] sm:$0xff]
          %v682 = vld [vmem:[#allocation5 + $0xc] sm:$0xff]
          %v683 = vstv %s680
          %v684 = vmul.f32 %v683, %v681
          %v685 = vmul.f32 %v683, %v682
          %v686 = vadd.f32 %v678, %v684
          %v687 = vadd.f32 %v679, %v685
          %s688 = sld [smem:[#allocation10 + $0x28]]
          %v689 = vld [vmem:[#allocation5 + $0x5] sm:$0xff]
          %v690 = vld [vmem:[#allocation5 + $0xd] sm:$0xff]
          %v691 = vstv %s688
          %v692 = vmul.f32 %v691, %v689
          %v693 = vmul.f32 %v691, %v690
          %v694 = vadd.f32 %v686, %v692
          %v695 = vadd.f32 %v687, %v693
          %s696 = sld [smem:[#allocation10 + $0x2f]]
          %v697 = vld [vmem:[#allocation5 + $0x6] sm:$0xff]
          %v698 = vld [vmem:[#allocation5 + $0xe] sm:$0xff]
          %v699 = vstv %s696
          %v700 = vmul.f32 %v699, %v697
          %v701 = vmul.f32 %v699, %v698
          %v702 = vadd.f32 %v694, %v700
          %v703 = vadd.f32 %v695, %v701
          %v704 = vld [vmem:[#allocation4] sm:$0xff]
          %v705 = vld [vmem:[#allocation4 + $0x8] sm:$0xff]
          %v706 = vld [vmem:[#allocation4 + $0x10] sm:$0x3f]
          %710 = vrot.lane.b32.xlu0 %v704, 122
          %v711 = vpop.permute.xlu0 %710
          %712 = vrot.lane.b32.xlu0 %v705, 122
          %v713 = vpop.permute.xlu0 %712
          %714 = vrot.lane.b32.xlu0 %v706, 122
          %v715 = vpop.permute.xlu0 %714
          %719 = vst.msk [vmem:[#allocation5] sm:$0xff] %vm222, %v711
          %720 = vst.msk [vmem:[#allocation5 + $0x8] sm:$0xff] %vm222, %v713
          %721 = vst.msk [vmem:[#allocation5 + $0x10] sm:$0x3f] %vm276, %v715
          %s722 = sld [smem:[#allocation10 + $0x6]]
          %v723 = vld [vmem:[#allocation5] sm:$0xff]
          %v724 = vld [vmem:[#allocation5 + $0x8] sm:$0xff]
          %v725 = vstv %s722
          %v726 = vmul.f32 %v725, %v723
          %v727 = vmul.f32 %v725, %v724
          %v728 = vadd.f32 %v702, %v726
          %v729 = vadd.f32 %v703, %v727
          %s730 = sld [smem:[#allocation10 + $0xd]]
          %v731 = vld [vmem:[#allocation5 + $0x1] sm:$0xff]
          %v732 = vld [vmem:[#allocation5 + $0x9] sm:$0xff]
          %v733 = vstv %s730
          %v734 = vmul.f32 %v733, %v731
          %v735 = vmul.f32 %v733, %v732
          %v736 = vadd.f32 %v728, %v734
          %v737 = vadd.f32 %v729, %v735
          %s738 = sld [smem:[#allocation10 + $0x14]]
          %v739 = vld [vmem:[#allocation5 + $0x2] sm:$0xff]
          %v740 = vld [vmem:[#allocation5 + $0xa] sm:$0xff]
          %v741 = vstv %s738
          %v742 = vmul.f32 %v741, %v739
          %v743 = vmul.f32 %v741, %v740
          %v744 = vadd.f32 %v736, %v742
          %v745 = vadd.f32 %v737, %v743
          %s746 = sld [smem:[#allocation10 + $0x1b]]
          %v747 = vld [vmem:[#allocation5 + $0x3] sm:$0xff]
          %v748 = vld [vmem:[#allocation5 + $0xb] sm:$0xff]
          %v749 = vstv %s746
          %v750 = vmul.f32 %v749, %v747
          %v751 = vmul.f32 %v749, %v748
          %v752 = vadd.f32 %v744, %v750
          %v753 = vadd.f32 %v745, %v751
          %s754 = sld [smem:[#allocation10 + $0x22]]
          %v755 = vld [vmem:[#allocation5 + $0x4] sm:$0xff]
          %v756 = vld [vmem:[#allocation5 + $0xc] sm:$0xff]
          %v757 = vstv %s754
          %v758 = vmul.f32 %v757, %v755
          %v759 = vmul.f32 %v757, %v756
          %v760 = vadd.f32 %v752, %v758
          %v761 = vadd.f32 %v753, %v759
          %s762 = sld [smem:[#allocation10 + $0x29]]
          %v763 = vld [vmem:[#allocation5 + $0x5] sm:$0xff]
          %v764 = vld [vmem:[#allocation5 + $0xd] sm:$0xff]
          %v765 = vstv %s762
          %v766 = vmul.f32 %v765, %v763
          %v767 = vmul.f32 %v765, %v764
          %v768 = vadd.f32 %v760, %v766
          %v769 = vadd.f32 %v761, %v767
          %s770 = sld [smem:[#allocation10 + $0x30]]
          %v771 = vld [vmem:[#allocation5 + $0x6] sm:$0xff]
          %v772 = vld [vmem:[#allocation5 + $0xe] sm:$0xff]
          %v773 = vstv %s770
          %v774 = vmul.f32 %v773, %v771
          %v775 = vmul.f32 %v773, %v772
          %v776 = vadd.f32 %v768, %v774
          %v777 = vadd.f32 %v769, %v775
          %v778 = vld [vmem:[%s239] sm:$0xff]
          %v779 = vld [vmem:[%s239 + $0x8] sm:$0xff]
          %v780 = vld [vmem:[%s239 + $0x10] sm:$0x3f]
          %781 = vst.msk [vmem:[#allocation5] sm:$0xff] %vm222, %v778
          %782 = vst.msk [vmem:[#allocation5 + $0x8] sm:$0xff] %vm222, %v779
          %783 = vst.msk [vmem:[#allocation5 + $0x10] sm:$0x3f] %vm276, %v780
          %s784 = sld [smem:[#allocation10 + $0x31]]
          %v785 = vld [vmem:[#allocation5] sm:$0xff]
          %v786 = vld [vmem:[#allocation5 + $0x8] sm:$0xff]
          %v787 = vstv %s784
          %v788 = vmul.f32 %v787, %v785
          %v789 = vmul.f32 %v787, %v786
          %v790 = vadd.f32 %v776, %v788
          %v791 = vadd.f32 %v777, %v789
          %s792 = sld [smem:[#allocation10 + $0x38]]
          %v793 = vld [vmem:[#allocation5 + $0x1] sm:$0xff]
          %v794 = vld [vmem:[#allocation5 + $0x9] sm:$0xff]
          %v795 = vstv %s792
          %v796 = vmul.f32 %v795, %v793
          %v797 = vmul.f32 %v795, %v794
          %v798 = vadd.f32 %v790, %v796
          %v799 = vadd.f32 %v791, %v797
          %s800 = sld [smem:[#allocation10 + $0x3f]]
          %v801 = vld [vmem:[#allocation5 + $0x2] sm:$0xff]
          %v802 = vld [vmem:[#allocation5 + $0xa] sm:$0xff]
          %v803 = vstv %s800
          %v804 = vmul.f32 %v803, %v801
          %v805 = vmul.f32 %v803, %v802
          %v806 = vadd.f32 %v798, %v804
          %v807 = vadd.f32 %v799, %v805
          %s808 = sld [smem:[#allocation10 + $0x46]]
          %v809 = vld [vmem:[#allocation5 + $0x3] sm:$0xff]
          %v810 = vld [vmem:[#allocation5 + $0xb] sm:$0xff]
          %v811 = vstv %s808
          %v812 = vmul.f32 %v811, %v809
          %v813 = vmul.f32 %v811, %v810
          %v814 = vadd.f32 %v806, %v812
          %v815 = vadd.f32 %v807, %v813
          %s816 = sld [smem:[#allocation10 + $0x4d]]
          %v817 = vld [vmem:[#allocation5 + $0x4] sm:$0xff]
          %v818 = vld [vmem:[#allocation5 + $0xc] sm:$0xff]
          %v819 = vstv %s816
          %v820 = vmul.f32 %v819, %v817
          %v821 = vmul.f32 %v819, %v818
          %v822 = vadd.f32 %v814, %v820
          %v823 = vadd.f32 %v815, %v821
          %s824 = sld [smem:[#allocation10 + $0x54]]
          %v825 = vld [vmem:[#allocation5 + $0x5] sm:$0xff]
          %v826 = vld [vmem:[#allocation5 + $0xd] sm:$0xff]
          %v827 = vstv %s824
          %v828 = vmul.f32 %v827, %v825
          %v829 = vmul.f32 %v827, %v826
          %v830 = vadd.f32 %v822, %v828
          %v831 = vadd.f32 %v823, %v829
          %s832 = sld [smem:[#allocation10 + $0x5b]]
          %v833 = vld [vmem:[#allocation5 + $0x6] sm:$0xff]
          %v834 = vld [vmem:[#allocation5 + $0xe] sm:$0xff]
          %v835 = vstv %s832
          %v836 = vmul.f32 %v835, %v833
          %v837 = vmul.f32 %v835, %v834
          %v838 = vadd.f32 %v830, %v836
          %v839 = vadd.f32 %v831, %v837
          %v840 = vld [vmem:[%s239] sm:$0xff]
          %v841 = vld [vmem:[%s239 + $0x8] sm:$0xff]
          %v842 = vld [vmem:[%s239 + $0x10] sm:$0x3f]
          %846 = vrot.lane.b32.xlu0 %v840, 127
          %v847 = vpop.permute.xlu0 %846
          %848 = vrot.lane.b32.xlu0 %v841, 127
          %v849 = vpop.permute.xlu0 %848
          %850 = vrot.lane.b32.xlu0 %v842, 127
          %v851 = vpop.permute.xlu0 %850
          %855 = vst.msk [vmem:[#allocation5] sm:$0xff] %vm222, %v847
          %856 = vst.msk [vmem:[#allocation5 + $0x8] sm:$0xff] %vm222, %v849
          %857 = vst.msk [vmem:[#allocation5 + $0x10] sm:$0x3f] %vm276, %v851
          %s858 = sld [smem:[#allocation10 + $0x32]]
          %v859 = vld [vmem:[#allocation5] sm:$0xff]
          %v860 = vld [vmem:[#allocation5 + $0x8] sm:$0xff]
          %v861 = vstv %s858
          %v862 = vmul.f32 %v861, %v859
          %v863 = vmul.f32 %v861, %v860
          %v864 = vadd.f32 %v838, %v862
          %v865 = vadd.f32 %v839, %v863
          %s866 = sld [smem:[#allocation10 + $0x39]]
          %v867 = vld [vmem:[#allocation5 + $0x1] sm:$0xff]
          %v868 = vld [vmem:[#allocation5 + $0x9] sm:$0xff]
          %v869 = vstv %s866
          %v870 = vmul.f32 %v869, %v867
          %v871 = vmul.f32 %v869, %v868
          %v872 = vadd.f32 %v864, %v870
          %v873 = vadd.f32 %v865, %v871
          %s874 = sld [smem:[#allocation10 + $0x40]]
          %v875 = vld [vmem:[#allocation5 + $0x2] sm:$0xff]
          %v876 = vld [vmem:[#allocation5 + $0xa] sm:$0xff]
          %v877 = vstv %s874
          %v878 = vmul.f32 %v877, %v875
          %v879 = vmul.f32 %v877, %v876
          %v880 = vadd.f32 %v872, %v878
          %v881 = vadd.f32 %v873, %v879
          %s882 = sld [smem:[#allocation10 + $0x47]]
          %v883 = vld [vmem:[#allocation5 + $0x3] sm:$0xff]
          %v884 = vld [vmem:[#allocation5 + $0xb] sm:$0xff]
          %v885 = vstv %s882
          %v886 = vmul.f32 %v885, %v883
          %v887 = vmul.f32 %v885, %v884
          %v888 = vadd.f32 %v880, %v886
          %v889 = vadd.f32 %v881, %v887
          %s890 = sld [smem:[#allocation10 + $0x4e]]
          %v891 = vld [vmem:[#allocation5 + $0x4] sm:$0xff]
          %v892 = vld [vmem:[#allocation5 + $0xc] sm:$0xff]
          %v893 = vstv %s890
          %v894 = vmul.f32 %v893, %v891
          %v895 = vmul.f32 %v893, %v892
          %v896 = vadd.f32 %v888, %v894
          %v897 = vadd.f32 %v889, %v895
          %s898 = sld [smem:[#allocation10 + $0x55]]
          %v899 = vld [vmem:[#allocation5 + $0x5] sm:$0xff]
          %v900 = vld [vmem:[#allocation5 + $0xd] sm:$0xff]
          %v901 = vstv %s898
          %v902 = vmul.f32 %v901, %v899
          %v903 = vmul.f32 %v901, %v900
          %v904 = vadd.f32 %v896, %v902
          %v905 = vadd.f32 %v897, %v903
          %s906 = sld [smem:[#allocation10 + $0x5c]]
          %v907 = vld [vmem:[#allocation5 + $0x6] sm:$0xff]
          %v908 = vld [vmem:[#allocation5 + $0xe] sm:$0xff]
          %v909 = vstv %s906
          %v910 = vmul.f32 %v909, %v907
          %v911 = vmul.f32 %v909, %v908
          %v912 = vadd.f32 %v904, %v910
          %v913 = vadd.f32 %v905, %v911
          %v914 = vld [vmem:[%s239] sm:$0xff]
          %v915 = vld [vmem:[%s239 + $0x8] sm:$0xff]
          %v916 = vld [vmem:[%s239 + $0x10] sm:$0x3f]
          %920 = vrot.lane.b32.xlu0 %v914, 126
          %v921 = vpop.permute.xlu0 %920
          %922 = vrot.lane.b32.xlu0 %v915, 126
          %v923 = vpop.permute.xlu0 %922
          %924 = vrot.lane.b32.xlu0 %v916, 126
          %v925 = vpop.permute.xlu0 %924
          %929 = vst.msk [vmem:[#allocation5] sm:$0xff] %vm222, %v921
          %930 = vst.msk [vmem:[#allocation5 + $0x8] sm:$0xff] %vm222, %v923
          %931 = vst.msk [vmem:[#allocation5 + $0x10] sm:$0x3f] %vm276, %v925
          %s932 = sld [smem:[#allocation10 + $0x33]]
          %v933 = vld [vmem:[#allocation5] sm:$0xff]
          %v934 = vld [vmem:[#allocation5 + $0x8] sm:$0xff]
          %v935 = vstv %s932
          %v936 = vmul.f32 %v935, %v933
          %v937 = vmul.f32 %v935, %v934
          %v938 = vadd.f32 %v912, %v936
          %v939 = vadd.f32 %v913, %v937
          %s940 = sld [smem:[#allocation10 + $0x3a]]
          %v941 = vld [vmem:[#allocation5 + $0x1] sm:$0xff]
          %v942 = vld [vmem:[#allocation5 + $0x9] sm:$0xff]
          %v943 = vstv %s940
          %v944 = vmul.f32 %v943, %v941
          %v945 = vmul.f32 %v943, %v942
          %v946 = vadd.f32 %v938, %v944
          %v947 = vadd.f32 %v939, %v945
          %s948 = sld [smem:[#allocation10 + $0x41]]
          %v949 = vld [vmem:[#allocation5 + $0x2] sm:$0xff]
          %v950 = vld [vmem:[#allocation5 + $0xa] sm:$0xff]
          %v951 = vstv %s948
          %v952 = vmul.f32 %v951, %v949
          %v953 = vmul.f32 %v951, %v950
          %v954 = vadd.f32 %v946, %v952
          %v955 = vadd.f32 %v947, %v953
          %s956 = sld [smem:[#allocation10 + $0x48]]
          %v957 = vld [vmem:[#allocation5 + $0x3] sm:$0xff]
          %v958 = vld [vmem:[#allocation5 + $0xb] sm:$0xff]
          %v959 = vstv %s956
          %v960 = vmul.f32 %v959, %v957
          %v961 = vmul.f32 %v959, %v958
          %v962 = vadd.f32 %v954, %v960
          %v963 = vadd.f32 %v955, %v961
          %s964 = sld [smem:[#allocation10 + $0x4f]]
          %v965 = vld [vmem:[#allocation5 + $0x4] sm:$0xff]
          %v966 = vld [vmem:[#allocation5 + $0xc] sm:$0xff]
          %v967 = vstv %s964
          %v968 = vmul.f32 %v967, %v965
          %v969 = vmul.f32 %v967, %v966
          %v970 = vadd.f32 %v962, %v968
          %v971 = vadd.f32 %v963, %v969
          %s972 = sld [smem:[#allocation10 + $0x56]]
          %v973 = vld [vmem:[#allocation5 + $0x5] sm:$0xff]
          %v974 = vld [vmem:[#allocation5 + $0xd] sm:$0xff]
          %v975 = vstv %s972
          %v976 = vmul.f32 %v975, %v973
          %v977 = vmul.f32 %v975, %v974
          %v978 = vadd.f32 %v970, %v976
          %v979 = vadd.f32 %v971, %v977
          %s980 = sld [smem:[#allocation10 + $0x5d]]
          %v981 = vld [vmem:[#allocation5 + $0x6] sm:$0xff]
          %v982 = vld [vmem:[#allocation5 + $0xe] sm:$0xff]
          %v983 = vstv %s980
          %v984 = vmul.f32 %v983, %v981
          %v985 = vmul.f32 %v983, %v982
          %v986 = vadd.f32 %v978, %v984
          %v987 = vadd.f32 %v979, %v985
          %v988 = vld [vmem:[%s239] sm:$0xff]
          %v989 = vld [vmem:[%s239 + $0x8] sm:$0xff]
          %v990 = vld [vmem:[%s239 + $0x10] sm:$0x3f]
          %994 = vrot.lane.b32.xlu0 %v988, 125
          %v995 = vpop.permute.xlu0 %994
          %996 = vrot.lane.b32.xlu0 %v989, 125
          %v997 = vpop.permute.xlu0 %996
          %998 = vrot.lane.b32.xlu0 %v990, 125
          %v999 = vpop.permute.xlu0 %998
          %1003 = vst.msk [vmem:[#allocation5] sm:$0xff] %vm222, %v995
          %1004 = vst.msk [vmem:[#allocation5 + $0x8] sm:$0xff] %vm222, %v997
          %1005 = vst.msk [vmem:[#allocation5 + $0x10] sm:$0x3f] %vm276, %v999
          %s1006 = sld [smem:[#allocation10 + $0x34]]
          %v1007 = vld [vmem:[#allocation5] sm:$0xff]
          %v1008 = vld [vmem:[#allocation5 + $0x8] sm:$0xff]
          %v1009 = vstv %s1006
          %v1010 = vmul.f32 %v1009, %v1007
          %v1011 = vmul.f32 %v1009, %v1008
          %v1012 = vadd.f32 %v986, %v1010
          %v1013 = vadd.f32 %v987, %v1011
          %s1014 = sld [smem:[#allocation10 + $0x3b]]
          %v1015 = vld [vmem:[#allocation5 + $0x1] sm:$0xff]
          %v1016 = vld [vmem:[#allocation5 + $0x9] sm:$0xff]
          %v1017 = vstv %s1014
          %v1018 = vmul.f32 %v1017, %v1015
          %v1019 = vmul.f32 %v1017, %v1016
          %v1020 = vadd.f32 %v1012, %v1018
          %v1021 = vadd.f32 %v1013, %v1019
          %s1022 = sld [smem:[#allocation10 + $0x42]]
          %v1023 = vld [vmem:[#allocation5 + $0x2] sm:$0xff]
          %v1024 = vld [vmem:[#allocation5 + $0xa] sm:$0xff]
          %v1025 = vstv %s1022
          %v1026 = vmul.f32 %v1025, %v1023
          %v1027 = vmul.f32 %v1025, %v1024
          %v1028 = vadd.f32 %v1020, %v1026
          %v1029 = vadd.f32 %v1021, %v1027
          %s1030 = sld [smem:[#allocation10 + $0x49]]
          %v1031 = vld [vmem:[#allocation5 + $0x3] sm:$0xff]
          %v1032 = vld [vmem:[#allocation5 + $0xb] sm:$0xff]
          %v1033 = vstv %s1030
          %v1034 = vmul.f32 %v1033, %v1031
          %v1035 = vmul.f32 %v1033, %v1032
          %v1036 = vadd.f32 %v1028, %v1034
          %v1037 = vadd.f32 %v1029, %v1035
          %s1038 = sld [smem:[#allocation10 + $0x50]]
          %v1039 = vld [vmem:[#allocation5 + $0x4] sm:$0xff]
          %v1040 = vld [vmem:[#allocation5 + $0xc] sm:$0xff]
          %v1041 = vstv %s1038
          %v1042 = vmul.f32 %v1041, %v1039
          %v1043 = vmul.f32 %v1041, %v1040
          %v1044 = vadd.f32 %v1036, %v1042
          %v1045 = vadd.f32 %v1037, %v1043
          %s1046 = sld [smem:[#allocation10 + $0x57]]
          %v1047 = vld [vmem:[#allocation5 + $0x5] sm:$0xff]
          %v1048 = vld [vmem:[#allocation5 + $0xd] sm:$0xff]
          %v1049 = vstv %s1046
          %v1050 = vmul.f32 %v1049, %v1047
          %v1051 = vmul.f32 %v1049, %v1048
          %v1052 = vadd.f32 %v1044, %v1050
          %v1053 = vadd.f32 %v1045, %v1051
          %s1054 = sld [smem:[#allocation10 + $0x5e]]
          %v1055 = vld [vmem:[#allocation5 + $0x6] sm:$0xff]
          %v1056 = vld [vmem:[#allocation5 + $0xe] sm:$0xff]
          %v1057 = vstv %s1054
          %v1058 = vmul.f32 %v1057, %v1055
          %v1059 = vmul.f32 %v1057, %v1056
          %v1060 = vadd.f32 %v1052, %v1058
          %v1061 = vadd.f32 %v1053, %v1059
          %v1062 = vld [vmem:[%s239] sm:$0xff]
          %v1063 = vld [vmem:[%s239 + $0x8] sm:$0xff]
          %v1064 = vld [vmem:[%s239 + $0x10] sm:$0x3f]
          %1068 = vrot.lane.b32.xlu0 %v1062, 124
          %v1069 = vpop.permute.xlu0 %1068
          %1070 = vrot.lane.b32.xlu0 %v1063, 124
          %v1071 = vpop.permute.xlu0 %1070
          %1072 = vrot.lane.b32.xlu0 %v1064, 124
          %v1073 = vpop.permute.xlu0 %1072
          %1077 = vst.msk [vmem:[#allocation5] sm:$0xff] %vm222, %v1069
          %1078 = vst.msk [vmem:[#allocation5 + $0x8] sm:$0xff] %vm222, %v1071
          %1079 = vst.msk [vmem:[#allocation5 + $0x10] sm:$0x3f] %vm276, %v1073
          %s1080 = sld [smem:[#allocation10 + $0x35]]
          %v1081 = vld [vmem:[#allocation5] sm:$0xff]
          %v1082 = vld [vmem:[#allocation5 + $0x8] sm:$0xff]
          %v1083 = vstv %s1080
          %v1084 = vmul.f32 %v1083, %v1081
          %v1085 = vmul.f32 %v1083, %v1082
          %v1086 = vadd.f32 %v1060, %v1084
          %v1087 = vadd.f32 %v1061, %v1085
          %s1088 = sld [smem:[#allocation10 + $0x3c]]
          %v1089 = vld [vmem:[#allocation5 + $0x1] sm:$0xff]
          %v1090 = vld [vmem:[#allocation5 + $0x9] sm:$0xff]
          %v1091 = vstv %s1088
          %v1092 = vmul.f32 %v1091, %v1089
          %v1093 = vmul.f32 %v1091, %v1090
          %v1094 = vadd.f32 %v1086, %v1092
          %v1095 = vadd.f32 %v1087, %v1093
          %s1096 = sld [smem:[#allocation10 + $0x43]]
          %v1097 = vld [vmem:[#allocation5 + $0x2] sm:$0xff]
          %v1098 = vld [vmem:[#allocation5 + $0xa] sm:$0xff]
          %v1099 = vstv %s1096
          %v1100 = vmul.f32 %v1099, %v1097
          %v1101 = vmul.f32 %v1099, %v1098
          %v1102 = vadd.f32 %v1094, %v1100
          %v1103 = vadd.f32 %v1095, %v1101
          %s1104 = sld [smem:[#allocation10 + $0x4a]]
          %v1105 = vld [vmem:[#allocation5 + $0x3] sm:$0xff]
          %v1106 = vld [vmem:[#allocation5 + $0xb] sm:$0xff]
          %v1107 = vstv %s1104
          %v1108 = vmul.f32 %v1107, %v1105
          %v1109 = vmul.f32 %v1107, %v1106
          %v1110 = vadd.f32 %v1102, %v1108
          %v1111 = vadd.f32 %v1103, %v1109
          %s1112 = sld [smem:[#allocation10 + $0x51]]
          %v1113 = vld [vmem:[#allocation5 + $0x4] sm:$0xff]
          %v1114 = vld [vmem:[#allocation5 + $0xc] sm:$0xff]
          %v1115 = vstv %s1112
          %v1116 = vmul.f32 %v1115, %v1113
          %v1117 = vmul.f32 %v1115, %v1114
          %v1118 = vadd.f32 %v1110, %v1116
          %v1119 = vadd.f32 %v1111, %v1117
          %s1120 = sld [smem:[#allocation10 + $0x58]]
          %v1121 = vld [vmem:[#allocation5 + $0x5] sm:$0xff]
          %v1122 = vld [vmem:[#allocation5 + $0xd] sm:$0xff]
          %v1123 = vstv %s1120
          %v1124 = vmul.f32 %v1123, %v1121
          %v1125 = vmul.f32 %v1123, %v1122
          %v1126 = vadd.f32 %v1118, %v1124
          %v1127 = vadd.f32 %v1119, %v1125
          %s1128 = sld [smem:[#allocation10 + $0x5f]]
          %v1129 = vld [vmem:[#allocation5 + $0x6] sm:$0xff]
          %v1130 = vld [vmem:[#allocation5 + $0xe] sm:$0xff]
          %v1131 = vstv %s1128
          %v1132 = vmul.f32 %v1131, %v1129
          %v1133 = vmul.f32 %v1131, %v1130
          %v1134 = vadd.f32 %v1126, %v1132
          %v1135 = vadd.f32 %v1127, %v1133
          %v1136 = vld [vmem:[%s239] sm:$0xff]
          %v1137 = vld [vmem:[%s239 + $0x8] sm:$0xff]
          %v1138 = vld [vmem:[%s239 + $0x10] sm:$0x3f]
          %1142 = vrot.lane.b32.xlu0 %v1136, 123
          %v1143 = vpop.permute.xlu0 %1142
          %1144 = vrot.lane.b32.xlu0 %v1137, 123
          %v1145 = vpop.permute.xlu0 %1144
          %1146 = vrot.lane.b32.xlu0 %v1138, 123
          %v1147 = vpop.permute.xlu0 %1146
          %1151 = vst.msk [vmem:[#allocation5] sm:$0xff] %vm222, %v1143
          %1152 = vst.msk [vmem:[#allocation5 + $0x8] sm:$0xff] %vm222, %v1145
          %1153 = vst.msk [vmem:[#allocation5 + $0x10] sm:$0x3f] %vm276, %v1147
          %s1154 = sld [smem:[#allocation10 + $0x36]]
          %v1155 = vld [vmem:[#allocation5] sm:$0xff]
          %v1156 = vld [vmem:[#allocation5 + $0x8] sm:$0xff]
          %v1157 = vstv %s1154
          %v1158 = vmul.f32 %v1157, %v1155
          %v1159 = vmul.f32 %v1157, %v1156
          %v1160 = vadd.f32 %v1134, %v1158
          %v1161 = vadd.f32 %v1135, %v1159
          %s1162 = sld [smem:[#allocation10 + $0x3d]]
          %v1163 = vld [vmem:[#allocation5 + $0x1] sm:$0xff]
          %v1164 = vld [vmem:[#allocation5 + $0x9] sm:$0xff]
          %v1165 = vstv %s1162
          %v1166 = vmul.f32 %v1165, %v1163
          %v1167 = vmul.f32 %v1165, %v1164
          %v1168 = vadd.f32 %v1160, %v1166
          %v1169 = vadd.f32 %v1161, %v1167
          %s1170 = sld [smem:[#allocation10 + $0x44]]
          %v1171 = vld [vmem:[#allocation5 + $0x2] sm:$0xff]
          %v1172 = vld [vmem:[#allocation5 + $0xa] sm:$0xff]
          %v1173 = vstv %s1170
          %v1174 = vmul.f32 %v1173, %v1171
          %v1175 = vmul.f32 %v1173, %v1172
          %v1176 = vadd.f32 %v1168, %v1174
          %v1177 = vadd.f32 %v1169, %v1175
          %s1178 = sld [smem:[#allocation10 + $0x4b]]
          %v1179 = vld [vmem:[#allocation5 + $0x3] sm:$0xff]
          %v1180 = vld [vmem:[#allocation5 + $0xb] sm:$0xff]
          %v1181 = vstv %s1178
          %v1182 = vmul.f32 %v1181, %v1179
          %v1183 = vmul.f32 %v1181, %v1180
          %v1184 = vadd.f32 %v1176, %v1182
          %v1185 = vadd.f32 %v1177, %v1183
          %s1186 = sld [smem:[#allocation10 + $0x52]]
          %v1187 = vld [vmem:[#allocation5 + $0x4] sm:$0xff]
          %v1188 = vld [vmem:[#allocation5 + $0xc] sm:$0xff]
          %v1189 = vstv %s1186
          %v1190 = vmul.f32 %v1189, %v1187
          %v1191 = vmul.f32 %v1189, %v1188
          %v1192 = vadd.f32 %v1184, %v1190
          %v1193 = vadd.f32 %v1185, %v1191
          %s1194 = sld [smem:[#allocation10 + $0x59]]
          %v1195 = vld [vmem:[#allocation5 + $0x5] sm:$0xff]
          %v1196 = vld [vmem:[#allocation5 + $0xd] sm:$0xff]
          %v1197 = vstv %s1194
          %v1198 = vmul.f32 %v1197, %v1195
          %v1199 = vmul.f32 %v1197, %v1196
          %v1200 = vadd.f32 %v1192, %v1198
          %v1201 = vadd.f32 %v1193, %v1199
          %s1202 = sld [smem:[#allocation10 + $0x60]]
          %v1203 = vld [vmem:[#allocation5 + $0x6] sm:$0xff]
          %v1204 = vld [vmem:[#allocation5 + $0xe] sm:$0xff]
          %v1205 = vstv %s1202
          %v1206 = vmul.f32 %v1205, %v1203
          %v1207 = vmul.f32 %v1205, %v1204
          %v1208 = vadd.f32 %v1200, %v1206
          %v1209 = vadd.f32 %v1201, %v1207
          %v1210 = vld [vmem:[%s239] sm:$0xff]
          %v1211 = vld [vmem:[%s239 + $0x8] sm:$0xff]
          %v1212 = vld [vmem:[%s239 + $0x10] sm:$0x3f]
          %1216 = vrot.lane.b32.xlu0 %v1210, 122
          %v1217 = vpop.permute.xlu0 %1216
          %1218 = vrot.lane.b32.xlu0 %v1211, 122
          %v1219 = vpop.permute.xlu0 %1218
          %1220 = vrot.lane.b32.xlu0 %v1212, 122
          %v1221 = vpop.permute.xlu0 %1220
          %1225 = vst.msk [vmem:[#allocation5] sm:$0xff] %vm222, %v1217
          %1226 = vst.msk [vmem:[#allocation5 + $0x8] sm:$0xff] %vm222, %v1219
          %1227 = vst.msk [vmem:[#allocation5 + $0x10] sm:$0x3f] %vm276, %v1221
          %s1228 = sld [smem:[#allocation10 + $0x37]]
          %v1229 = vld [vmem:[#allocation5] sm:$0xff]
          %v1230 = vld [vmem:[#allocation5 + $0x8] sm:$0xff]
          %v1231 = vstv %s1228
          %v1232 = vmul.f32 %v1231, %v1229
          %v1233 = vmul.f32 %v1231, %v1230
          %v1234 = vadd.f32 %v1208, %v1232
          %v1235 = vadd.f32 %v1209, %v1233
          %s1236 = sld [smem:[#allocation10 + $0x3e]]
          %v1237 = vld [vmem:[#allocation5 + $0x1] sm:$0xff]
          %v1238 = vld [vmem:[#allocation5 + $0x9] sm:$0xff]
          %v1239 = vstv %s1236
          %v1240 = vmul.f32 %v1239, %v1237
          %v1241 = vmul.f32 %v1239, %v1238
          %v1242 = vadd.f32 %v1234, %v1240
          %v1243 = vadd.f32 %v1235, %v1241
          %s1244 = sld [smem:[#allocation10 + $0x45]]
          %v1245 = vld [vmem:[#allocation5 + $0x2] sm:$0xff]
          %v1246 = vld [vmem:[#allocation5 + $0xa] sm:$0xff]
          %v1247 = vstv %s1244
          %v1248 = vmul.f32 %v1247, %v1245
          %v1249 = vmul.f32 %v1247, %v1246
          %v1250 = vadd.f32 %v1242, %v1248
          %v1251 = vadd.f32 %v1243, %v1249
          %s1252 = sld [smem:[#allocation10 + $0x4c]]
          %v1253 = vld [vmem:[#allocation5 + $0x3] sm:$0xff]
          %v1254 = vld [vmem:[#allocation5 + $0xb] sm:$0xff]
          %v1255 = vstv %s1252
          %v1256 = vmul.f32 %v1255, %v1253
          %v1257 = vmul.f32 %v1255, %v1254
          %v1258 = vadd.f32 %v1250, %v1256
          %v1259 = vadd.f32 %v1251, %v1257
          %s1260 = sld [smem:[#allocation10 + $0x53]]
          %v1261 = vld [vmem:[#allocation5 + $0x4] sm:$0xff]
          %v1262 = vld [vmem:[#allocation5 + $0xc] sm:$0xff]
          %v1263 = vstv %s1260
          %v1264 = vmul.f32 %v1263, %v1261
          %v1265 = vmul.f32 %v1263, %v1262
          %v1266 = vadd.f32 %v1258, %v1264
          %v1267 = vadd.f32 %v1259, %v1265
          %s1268 = sld [smem:[#allocation10 + $0x5a]]
          %v1269 = vld [vmem:[#allocation5 + $0x5] sm:$0xff]
          %v1270 = vld [vmem:[#allocation5 + $0xd] sm:$0xff]
          %v1271 = vstv %s1268
          %v1272 = vmul.f32 %v1271, %v1269
          %v1273 = vmul.f32 %v1271, %v1270
          %v1274 = vadd.f32 %v1266, %v1272
          %v1275 = vadd.f32 %v1267, %v1273
          %s1276 = sld [smem:[#allocation10 + $0x61]]
          %v1277 = vld [vmem:[#allocation5 + $0x6] sm:$0xff]
          %v1278 = vld [vmem:[#allocation5 + $0xe] sm:$0xff]
          %v1279 = vstv %s1276
          %v1280 = vmul.f32 %v1279, %v1277
          %v1281 = vmul.f32 %v1279, %v1278
          %v1282 = vadd.f32 %v1274, %v1280
          %v1283 = vadd.f32 %v1275, %v1281
          %v1284 = vxor.u32 %v1282, 2147483648
          %v1285 = vxor.u32 %v1283, 2147483648
          %v1286 = vmul.f32 %v1284, 1.442695
          %v1287 = vpow.pop %v1286
          %v1288 = vmul.f32 %v1285, 1.442695
          %v1289 = vpow.pop %v1288
          %v1290 = vadd.f32 %v1287, 1.0
          %v1291 = vadd.f32 %v1289, 1.0
          %v1292 = vrcp.pop %v1290
          %v1293 = vmul.f32 %v1290, %v1292
          %v1294 = vsub.f32 1.0, %v1293
          %v1295 = vmul.f32 %v1292, %v1294
          %v1296 = vadd.f32 %v1292, %v1295
          %vm1297 = vweird.f32 %v1290
          %vm1298 = vweird.f32 %v1292
          %vm1299 = vmor %vm1297, %vm1298
          %v1300 = vsel %vm1299, %v1292, %v1296
          %v1301 = vand.u32 2147483647, %v1290
          %vm1302 = vcmp.eq.f32.partialorder %v1301, 8.507059e+37
          %v1303 = vand.u32 %v1290, 2147483648
          %v1304 = vor.u32 1.1754944e-38, %v1303
          %v1305 = vsel %vm1302, %v1304, %v1300
          %v1306 = vmul.f32 1.0, %v1305
          %v1307 = vrcp.pop %v1291
          %v1308 = vmul.f32 %v1291, %v1307
          %v1309 = vsub.f32 1.0, %v1308
          %v1310 = vmul.f32 %v1307, %v1309
          %v1311 = vadd.f32 %v1307, %v1310
          %vm1312 = vweird.f32 %v1291
          %vm1313 = vweird.f32 %v1307
          %vm1314 = vmor %vm1312, %vm1313
          %v1315 = vsel %vm1314, %v1307, %v1311
          %v1316 = vand.u32 2147483647, %v1291
          %vm1317 = vcmp.eq.f32.partialorder %v1316, 8.507059e+37
          %v1318 = vand.u32 %v1291, 2147483648
          %v1319 = vor.u32 1.1754944e-38, %v1318
          %v1320 = vsel %vm1317, %v1319, %v1315
          %v1321 = vmul.f32 1.0, %v1320
          %1322 = vst.msk [vmem:[%s194] sm:$0xff] %vm222, %v1306
          %1323 = vst.msk [vmem:[%s194 + $0x8] sm:$0xff] %vm222, %v1321
        $region44: #{tpu_custom_call.1} parent=27 // pred_fallthru
          _
        %s1324 = sand.u32 %s89, 1
        %s1325 = scalar_lea.sflag [#allocation8], %s1324
        %s1326 = sand.u32 %s89, 1
        %s1327 = smul.addr %s1326, 16
        %s1328 = scalar_lea.vmem [#allocation11], %s1327
        // Predicated region
        $region45: #{tpu_custom_call.1} parent=27 // pred_check
          %p1329 = pneg %p99
        $region46: #{tpu_custom_call.1} parent=27 // pred_check_branch
          %1331 = sbr.rel (%p1329) target = $region48
        $region47: #{tpu_custom_call.1} parent=27 // pred_region
          %1333 = vsyncadd %s1325, 0
          %s1334 = smul.addr %s24, 2
          %s1335 = smul.addr %s1334, 8
          %s1336 = scalar_lea.hbm %s2, %s1335
          %s1337 = sshll.u32 %s1328, 4
          %s1338 = int_to_ptr.vmem [resolvable:$true] %s1337
          %s1339 = sshll.u32 %s1336, 4
          %s1340 = int_to_ptr.hbm [resolvable:$true] %s1339
          %1345 = dma.vmem_to_hbm [thread:$0]  %s1338, 256, %s1340, %s1325, 128, 128, 8
        $region48: #{tpu_custom_call.1} parent=27 // pred_fallthru
          _
      $region28: #{tpu_custom_call.1} parent=5 // pred_fallthru
        _
      %p1346 = scmp.le.s32.totalorder 2, %s15
      // Predicated region
      $region49: #{tpu_custom_call.1} parent=5 // pred_check
        %p1347 = pneg %p1346
      $region50: #{tpu_custom_call.1} parent=5 // pred_check_branch
        %1349 = sbr.rel (%p1347) target = $region52
      $region51: #{tpu_custom_call.1} parent=5 // pred_region
        %s1350 = ssub.s32 %s15, 2
        // Predicated region
        $region53: #{tpu_custom_call.1} parent=51 // pred_check
          %p1351 = pneg %p105
        $region54: #{tpu_custom_call.1} parent=51 // pred_check_branch
          %1353 = sbr.rel (%p1351) target = $region56
        $region55: #{tpu_custom_call.1} parent=51 // pred_region
          %s1354 = sand.u32 %s90, 1
          %s1355 = scalar_lea.sflag [#allocation8], %s1354
          %s1356 = sand.u32 %s90, 1
          %s1357 = smul.addr %s1356, 16
          %s1358 = scalar_lea.vmem [#allocation11], %s1357
          %1360 = dma.done %s1355, 256
        $region56: #{tpu_custom_call.1} parent=51 // pred_fallthru
          _
      $region52: #{tpu_custom_call.1} parent=5 // pred_fallthru
        _
    $region6: #{tpu_custom_call.1} parent=1 // loop_footer
      %s19 = sadd.s32 1, %s15
    $region7: #{tpu_custom_call.1} parent=1 // loop_footer_branch
      %14 = sbr.rel target = $region3
    $region8: #{tpu_custom_call.1} parent=1 // loop_exit
      _
    %1361 = vsyncpa [#allocation7], 1
    %s1362 = scalar_lea.sflag [#allocation7], 1
    %1363 = vsyncpa %s1362, 1
    %1364 = vsyncpa [#allocation8], 1
    %s1365 = scalar_lea.sflag [#allocation8], 1
    %1366 = vsyncpa %s1365, 1
    %1367 = vsyncpa [#allocation9], 1
    %s1368 = scalar_lea.sflag [#allocation9], 1
    %1369 = vsyncpa %s1368, 1

</llo_original>
